<compile_context>
chip_gen: v6e
topology: v6e:2x2x1
jax: 0.10.0
libtpu: 0.0.40
codegen_flags: <defaults>
</compile_context>

<pallas_src>
import functools

import jax
import jax.numpy as jnp
from jax import lax
from jax.experimental import pallas as pl
from jax.experimental.pallas import tpu as pltpu

# Problem sizes (fixed by the module definition).
L = 20          # sequence length implied by Linear(20*64, ...)
L_PAD = 24      # next multiple of 8 >= L; zero pad rows provide conv boundary zeros
C_IN = 64
C_MID = 128
C_OUT = 64
LATENT = 128
EPS = 1e-5


def _round_up(a, m):
    return ((a + m - 1) // m) * m


def _tpu_defaults():
    """(tb_max, vmem_limit_bytes, min_grid_steps) per TPU generation; safe fallback otherwise."""
    kind = ""
    try:
        kind = jax.devices()[0].device_kind.lower()
    except Exception:
        pass
    if "v7" in kind:
        # 64 MiB VMEM per TC, 2 TCs/chip: smaller tile, aim for >= 2 parallel grid steps.
        return 128, 48 * 1024 * 1024, 2
    if "v5" in kind or "v6" in kind:
        # 128 MiB VMEM, 1 TC: fat tiles amortize the ~0.35us/step overhead and weight re-touch.
        return 256, 64 * 1024 * 1024, 1
    return 128, 32 * 1024 * 1024, 1


def _encoder_kernel(x_ref, w1_ref, b1_ref, w2_ref, b2_ref,
                    fcw_ref, fcb_ref, g_ref, beta_ref,
                    o_ref, h2_ref, *, tb):
    f32 = jnp.float32
    bf16 = jnp.bfloat16
    m2 = tb * L_PAD

    # Input block is already zero-padded on the host (rows l in [L, L_PAD) are zero).
    # Flatten batch & length so every conv matmul has M = tb*L_PAD rows.
    x2d = x_ref[...].reshape(m2, C_IN)                      # (tb*24, 64)

    # Mask marking "real" (l < 20) rows in the flattened layout.
    row = lax.broadcasted_iota(jnp.int32, (m2, 1), 0)
    valid = lax.rem(row, L_PAD) < L

    def conv3(h, w_ref, b_ref):
        # 3-tap "same" Conv1d as ONE deep-K MXU matmul (im2col on lanes).
        # Zero pad rows between samples make the rolled-in neighbours correct at every
        # sample boundary (including the global wrap-around row of the roll).
        prev = pltpu.roll(h, shift=1, axis=0)               # row i <- h[i-1]  (tap k=0)
        nxt = pltpu.roll(h, shift=m2 - 1, axis=0)           # row i <- h[i+1]  (tap k=2)
        cat = jnp.concatenate(                               # bf16 BEFORE concat: half the bytes
            [prev.astype(bf16), h.astype(bf16), nxt.astype(bf16)], axis=-1)
        return jnp.dot(cat, w_ref[...], preferred_element_type=f32) + b_ref[...]

    # conv1 -> ReLU, with pad-row zeroing folded into the same select pass
    # (pad rows must be zero so conv2's rolls see correct boundary zeros).
    h1 = jnp.where(valid, jnp.maximum(conv3(x2d, w1_ref, b1_ref), 0.0), 0.0)
    # conv2 -> ReLU (pad-row outputs are garbage but never read below).
    h2 = jnp.maximum(conv3(h1, w2_ref, b2_ref), 0.0)        # (m2, 64)

    # Linear(20*64 -> 128) as ONE deep-K matmul (K = L*C_OUT = 1280):
    # stage conv2 output once, gather the 20 real per-sample rows side-by-side on lanes
    # (column index l*C_OUT + c; PyTorch's channel-major flatten is absorbed into the
    # host-side fc weight permutation), then a single (tb,1280)@(1280,128) MXU matmul.
    h2_ref[...] = h2.reshape(tb, L_PAD, C_OUT)
    fc_in = jnp.concatenate([h2_ref[:, l, :] for l in range(L)], axis=-1)   # (tb, 1280)
    y = jnp.dot(fc_in.astype(bf16), fcw_ref[...],
                preferred_element_type=f32) + fcb_ref[...]                   # (tb, 128)

    # LayerNorm(128), kept in f32.
    mu = jnp.mean(y, axis=-1, keepdims=True)
    var = jnp.mean((y - mu) ** 2, axis=-1, keepdims=True)
    yn = (y - mu) * lax.rsqrt(var + EPS)
    o_ref[...] = (yn * g_ref[...] + beta_ref[...]).astype(o_ref.dtype)


def waveform_encoder(x, params, tb_max=None, vmem_limit=None, min_steps=None):
    """x: (B, L, C_IN) float32 -> (B, LATENT) float32."""
    w1, b1, w2, b2, wfc, bfc, gamma, beta = params
    B = x.shape[0]
    assert x.shape == (B, L, C_IN)

    d_tb, d_vmem, d_steps = _tpu_defaults()
    tb_max = d_tb if tb_max is None else tb_max
    vmem_limit = d_vmem if vmem_limit is None else vmem_limit
    min_steps = d_steps if min_steps is None else min_steps

    # Batch tile: as big as the per-generation cap allows, but split into >= min_steps
    # parallel grid steps (v7x: keep both TensorCores busy).
    tb = max(8, min(tb_max, _round_up(pl.cdiv(B, min_steps), 8)))
    n_blocks = pl.cdiv(B, tb)
    b_pad = n_blocks * tb

    # Host-side zero padding: rows l in [L, L_PAD) provide the conv "same" boundary zeros
    # and make the inbound block (8,128)-aligned; the batch is padded to a whole number of
    # tiles so no tail block ever reads out-of-bounds HBM (padded outputs are sliced off).
    xp = jnp.pad(x.astype(jnp.float32), ((0, b_pad - B), (0, L_PAD - L), (0, 0)))

    # Host-side weight prep (layout plumbing only):
    #   conv taps fused along K, row index = k*C_in + c_in  (tap order: x[l-1], x[l], x[l+1])
    w1cat = jnp.transpose(w1, (2, 1, 0)).reshape(3 * C_IN, C_MID).astype(jnp.bfloat16)
    w2cat = jnp.transpose(w2, (2, 1, 0)).reshape(3 * C_MID, C_OUT).astype(jnp.bfloat16)
    #   PyTorch flattens (B, C_OUT, L) channel-major (col = c*L + l); the kernel's fused FC
    #   operand has col = l*C_OUT + c, so permute: fcw[l*C_OUT + c, o] = wfc[o, c*L + l].
    fcw = jnp.transpose(wfc.reshape(LATENT, C_OUT, L), (2, 1, 0)) \
             .reshape(L * C_OUT, LATENT).astype(jnp.bfloat16)
    b1r = b1.reshape(1, C_MID).astype(jnp.float32)
    b2r = b2.reshape(1, C_OUT).astype(jnp.float32)
    fcbr = bfc.reshape(1, LATENT).astype(jnp.float32)
    gr = gamma.reshape(1, LATENT).astype(jnp.float32)
    br = beta.reshape(1, LATENT).astype(jnp.float32)

    kernel = functools.partial(_encoder_kernel, tb=tb)

    out = pl.pallas_call(
        kernel,
        out_shape=jax.ShapeDtypeStruct((b_pad, LATENT), jnp.float32),
        grid_spec=pltpu.PrefetchScalarGridSpec(
            num_scalar_prefetch=0,
            grid=(n_blocks,),
            in_specs=[
                pl.BlockSpec((tb, L_PAD, C_IN), lambda b: (b, 0, 0)),     # zero-padded input
                pl.BlockSpec((3 * C_IN, C_MID), lambda b: (0, 0)),        # conv1 fused-K weight
                pl.BlockSpec((1, C_MID), lambda b: (0, 0)),               # conv1 bias
                pl.BlockSpec((3 * C_MID, C_OUT), lambda b: (0, 0)),       # conv2 fused-K weight
                pl.BlockSpec((1, C_OUT), lambda b: (0, 0)),               # conv2 bias
                pl.BlockSpec((L * C_OUT, LATENT), lambda b: (0, 0)),      # fc weight (permuted)
                pl.BlockSpec((1, LATENT), lambda b: (0, 0)),              # fc bias
                pl.BlockSpec((1, LATENT), lambda b: (0, 0)),              # layernorm gamma
                pl.BlockSpec((1, LATENT), lambda b: (0, 0)),              # layernorm beta
            ],
            out_specs=pl.BlockSpec((tb, LATENT), lambda b: (b, 0)),       # lane-dense output
            scratch_shapes=[
                pltpu.VMEM((tb, L_PAD, C_OUT), jnp.float32),              # conv2 staging for FC
            ],
        ),
        compiler_params=pltpu.CompilerParams(
            dimension_semantics=("parallel",),
            vmem_limit_bytes=vmem_limit,
        ),
    )(xp, w1cat, b1r, w2cat, b2r, fcw, fcbr, gr, br)
    return out[:B]


def reference(x, params):
    """Pure-JAX reference matching the PyTorch forward pass."""
    w1, b1, w2, b2, wfc, bfc, gamma, beta = params
    B = x.shape[0]
    h = jnp.transpose(x, (0, 2, 1))  # (B, C, L) -- NCL like PyTorch

    def conv1d_same(h, w, b):
        hp = jnp.pad(h, ((0, 0), (0, 0), (1, 1)))
        out = (jnp.einsum('bil,oi->bol', hp[:, :, 0:L], w[:, :, 0])
               + jnp.einsum('bil,oi->bol', hp[:, :, 1:L + 1], w[:, :, 1])
               + jnp.einsum('bil,oi->bol', hp[:, :, 2:L + 2], w[:, :, 2]))
        return out + b[None, :, None]

    h = jax.nn.relu(conv1d_same(h, w1, b1))
    h = jax.nn.relu(conv1d_same(h, w2, b2))
    flat = h.reshape(B, -1)                      # channel-major flatten, index = c*L + l
    y = flat @ wfc.T + bfc
    mu = y.mean(-1, keepdims=True)
    var = ((y - mu) ** 2).mean(-1, keepdims=True)
    return (y - mu) / jnp.sqrt(var + EPS) * gamma + beta


def init_params(key):
    ks = jax.random.split(key, 6)
    k1 = 1.0 / jnp.sqrt(C_IN * 3.0)
    k2 = 1.0 / jnp.sqrt(C_MID * 3.0)
    kf = 1.0 / jnp.sqrt(float(L * C_OUT))
    w1 = jax.random.uniform(ks[0], (C_MID, C_IN, 3), jnp.float32, -k1, k1)
    b1 = jax.random.uniform(ks[1], (C_MID,), jnp.float32, -k1, k1)
    w2 = jax.random.uniform(ks[2], (C_OUT, C_MID, 3), jnp.float32, -k2, k2)
    b2 = jax.random.uniform(ks[3], (C_OUT,), jnp.float32, -k2, k2)
    wfc = jax.random.uniform(ks[4], (LATENT, L * C_OUT), jnp.float32, -kf, kf)
    bfc = jax.random.uniform(ks[5], (LATENT,), jnp.float32, -kf, kf)
    gamma = jnp.ones((LATENT,), jnp.float32)
    beta = jnp.zeros((LATENT,), jnp.float32)
    return (w1, b1, w2, b2, wfc, bfc, gamma, beta)


if __name__ == "__main__":
    key = jax.random.PRNGKey(0)
    pk, xk = jax.random.split(key)
    params = init_params(pk)

    B = 8
    x = jax.random.normal(xk, (B, L, C_IN), jnp.float32)   # waveform: (batch, seq=20, feat=64)

    out = jax.block_until_ready(waveform_encoder(x, params))

    ref = reference(x, params)
    assert out.shape == (B, LATENT)
    assert jnp.allclose(out, ref, rtol=5e-2, atol=5e-2), (
        f"mismatch, max abs diff = {jnp.max(jnp.abs(out - ref))}")

    print("KERNEL_OK")
</pallas_src>

<mosaic_0001>
module attributes {stable_mosaic.version = 11 : i64} {
  func.func @_encoder_kernel(%arg0: i32, %arg1: memref<8x24x64xf32, #tpu.memory_space<vmem>>, %arg2: memref<192x128xbf16, #tpu.memory_space<vmem>>, %arg3: memref<1x128xf32, #tpu.memory_space<vmem>>, %arg4: memref<384x64xbf16, #tpu.memory_space<vmem>>, %arg5: memref<1x64xf32, #tpu.memory_space<vmem>>, %arg6: memref<1280x128xbf16, #tpu.memory_space<vmem>>, %arg7: memref<1x128xf32, #tpu.memory_space<vmem>>, %arg8: memref<1x128xf32, #tpu.memory_space<vmem>>, %arg9: memref<1x128xf32, #tpu.memory_space<vmem>>, %arg10: memref<8x128xf32, #tpu.memory_space<vmem>>, %arg11: memref<8x24x64xf32, #tpu.memory_space<vmem>>) attributes {dimension_semantics = [#tpu.dimension_semantics<parallel>], iteration_bounds = array<i64: 1>, scalar_prefetch = 0 : i64, scratch_operands = 1 : i64, tpu.core_type = #tpu.core_type<tc>, window_params = [{transform_indices = @transform_0, window_bounds = array<i64: 8, 24, 64>}, {pipeline_mode = #tpu.pipeline_mode<synchronous>, transform_indices = @transform_1, window_bounds = array<i64: 192, 128>}, {pipeline_mode = #tpu.pipeline_mode<synchronous>, transform_indices = @transform_2, window_bounds = array<i64: 1, 128>}, {pipeline_mode = #tpu.pipeline_mode<synchronous>, transform_indices = @transform_3, window_bounds = array<i64: 384, 64>}, {pipeline_mode = #tpu.pipeline_mode<synchronous>, transform_indices = @transform_4, window_bounds = array<i64: 1, 64>}, {pipeline_mode = #tpu.pipeline_mode<synchronous>, transform_indices = @transform_5, window_bounds = array<i64: 1280, 128>}, {pipeline_mode = #tpu.pipeline_mode<synchronous>, transform_indices = @transform_6, window_bounds = array<i64: 1, 128>}, {pipeline_mode = #tpu.pipeline_mode<synchronous>, transform_indices = @transform_7, window_bounds = array<i64: 1, 128>}, {pipeline_mode = #tpu.pipeline_mode<synchronous>, transform_indices = @transform_8, window_bounds = array<i64: 1, 128>}, {transform_indices = @transform_9, window_bounds = array<i64: 8, 128>}]} {
    %c0 = arith.constant 0 : index
    %c0_0 = arith.constant 0 : index
    %c0_1 = arith.constant 0 : index
    %0 = vector.load %arg1[%c0, %c0_0, %c0_1] : memref<8x24x64xf32, #tpu.memory_space<vmem>>, vector<8x24x64xf32>
    %1 = vector.shape_cast %0 : vector<8x24x64xf32> to vector<192x64xf32>
    %2 = tpu.iota {dimensions = array<i32: 0>} : vector<192x1xi32>
    %c24_i32 = arith.constant 24 : i32
    %3 = vector.broadcast %c24_i32 : i32 to vector<192x1xi32>
    %4 = arith.remsi %2, %3 : vector<192x1xi32>
    %c20_i32 = arith.constant 20 : i32
    %5 = vector.broadcast %c20_i32 : i32 to vector<192x1xi32>
    %6 = arith.cmpi slt, %4, %5 : vector<192x1xi32>
    %c1_i32 = arith.constant 1 : i32
    %7 = tpu.dynamic_rotate %1 by %c1_i32 dim 0 : vector<192x64xf32>, i32 -> vector<192x64xf32>
    %c191_i32 = arith.constant 191 : i32
    %8 = tpu.dynamic_rotate %1 by %c191_i32 dim 0 : vector<192x64xf32>, i32 -> vector<192x64xf32>
    %9 = arith.truncf %7 : vector<192x64xf32> to vector<192x64xbf16>
    %10 = arith.truncf %1 : vector<192x64xf32> to vector<192x64xbf16>
    %11 = arith.truncf %8 : vector<192x64xf32> to vector<192x64xbf16>
    %12 = tpu.concatenate %9, %10, %11 in 1 : vector<192x64xbf16>, vector<192x64xbf16>, vector<192x64xbf16> -> vector<192x192xbf16>
    %c0_2 = arith.constant 0 : index
    %c0_3 = arith.constant 0 : index
    %13 = vector.load %arg2[%c0_2, %c0_3] : memref<192x128xbf16, #tpu.memory_space<vmem>>, vector<192x128xbf16>
    %cst = arith.constant dense<0.000000e+00> : vector<192x128xf32>
    %14 = tpu.matmul %12, %13, %cst {dimension_numbers = #tpu.dot_dimension_numbers<[1], [0], [0], [1], [0, 0, 1, 1], [], []>} : vector<192x192xbf16>, vector<192x128xbf16>, vector<192x128xf32> -> vector<192x128xf32>
    %c0_4 = arith.constant 0 : index
    %c0_5 = arith.constant 0 : index
    %15 = vector.load %arg3[%c0_4, %c0_5] : memref<1x128xf32, #tpu.memory_space<vmem>>, vector<1x128xf32>
    %16 = vector.broadcast %15 : vector<1x128xf32> to vector<192x128xf32>
    %17 = arith.addf %14, %16 : vector<192x128xf32>
    %cst_6 = arith.constant 0.000000e+00 : f32
    %18 = vector.broadcast %cst_6 : f32 to vector<192x128xf32>
    %19 = arith.maximumf %17, %18 : vector<192x128xf32>
    %cst_7 = arith.constant 0.000000e+00 : f32
    %20 = vector.shape_cast %6 : vector<192x1xi1> to vector<192x1xi1>
    %21 = vector.broadcast %20 : vector<192x1xi1> to vector<192x128xi1>
    %22 = vector.broadcast %cst_7 : f32 to vector<192x128xf32>
    %23 = arith.select %21, %19, %22 : vector<192x128xi1>, vector<192x128xf32>
    %c1_i32_8 = arith.constant 1 : i32
    %24 = tpu.dynamic_rotate %23 by %c1_i32_8 dim 0 : vector<192x128xf32>, i32 -> vector<192x128xf32>
    %c191_i32_9 = arith.constant 191 : i32
    %25 = tpu.dynamic_rotate %23 by %c191_i32_9 dim 0 : vector<192x128xf32>, i32 -> vector<192x128xf32>
    %26 = arith.truncf %24 : vector<192x128xf32> to vector<192x128xbf16>
    %27 = arith.truncf %23 : vector<192x128xf32> to vector<192x128xbf16>
    %28 = arith.truncf %25 : vector<192x128xf32> to vector<192x128xbf16>
    %29 = tpu.concatenate %26, %27, %28 in 1 : vector<192x128xbf16>, vector<192x128xbf16>, vector<192x128xbf16> -> vector<192x384xbf16>
    %c0_10 = arith.constant 0 : index
    %c0_11 = arith.constant 0 : index
    %30 = vector.load %arg4[%c0_10, %c0_11] : memref<384x64xbf16, #tpu.memory_space<vmem>>, vector<384x64xbf16>
    %cst_12 = arith.constant dense<0.000000e+00> : vector<192x64xf32>
    %31 = tpu.matmul %29, %30, %cst_12 {dimension_numbers = #tpu.dot_dimension_numbers<[1], [0], [0], [1], [0, 0, 1, 1], [], []>} : vector<192x384xbf16>, vector<384x64xbf16>, vector<192x64xf32> -> vector<192x64xf32>
    %c0_13 = arith.constant 0 : index
    %c0_14 = arith.constant 0 : index
    %32 = vector.load %arg5[%c0_13, %c0_14] : memref<1x64xf32, #tpu.memory_space<vmem>>, vector<1x64xf32>
    %33 = vector.broadcast %32 : vector<1x64xf32> to vector<192x64xf32>
    %34 = arith.addf %31, %33 : vector<192x64xf32>
    %cst_15 = arith.constant 0.000000e+00 : f32
    %35 = vector.broadcast %cst_15 : f32 to vector<192x64xf32>
    %36 = arith.maximumf %34, %35 : vector<192x64xf32>
    %37 = vector.shape_cast %36 : vector<192x64xf32> to vector<8x24x64xf32>
    %c0_16 = arith.constant 0 : index
    %c0_17 = arith.constant 0 : index
    %c0_18 = arith.constant 0 : index
    %38 = vector.load %arg11[%c0_16, %c0_17, %c0_18] : memref<8x24x64xf32, #tpu.memory_space<vmem>>, vector<8x24x64xf32>
    tpu.vector_store %arg11[%c0_16, %c0_17, %c0_18], %37 {strides = array<i32>} : memref<8x24x64xf32, #tpu.memory_space<vmem>>, vector<8x24x64xf32>,
    %c0_19 = arith.constant 0 : index
    %c0_20 = arith.constant 0 : index
    %c0_21 = arith.constant 0 : index
    %39 = vector.load %arg11[%c0_19, %c0_20, %c0_21] : memref<8x24x64xf32, #tpu.memory_space<vmem>>, vector<8x1x64xf32>
    %40 = vector.shape_cast %39 : vector<8x1x64xf32> to vector<8x64xf32>
    %c0_22 = arith.constant 0 : index
    %c1 = arith.constant 1 : index
    %c0_23 = arith.constant 0 : index
    %41 = vector.load %arg11[%c0_22, %c1, %c0_23] : memref<8x24x64xf32, #tpu.memory_space<vmem>>, vector<8x1x64xf32>
    %42 = vector.shape_cast %41 : vector<8x1x64xf32> to vector<8x64xf32>
    %c0_24 = arith.constant 0 : index
    %c2 = arith.constant 2 : index
    %c0_25 = arith.constant 0 : index
    %43 = vector.load %arg11[%c0_24, %c2, %c0_25] : memref<8x24x64xf32, #tpu.memory_space<vmem>>, vector<8x1x64xf32>
    %44 = vector.shape_cast %43 : vector<8x1x64xf32> to vector<8x64xf32>
    %c0_26 = arith.constant 0 : index
    %c3 = arith.constant 3 : index
    %c0_27 = arith.constant 0 : index
    %45 = vector.load %arg11[%c0_26, %c3, %c0_27] : memref<8x24x64xf32, #tpu.memory_space<vmem>>, vector<8x1x64xf32>
    %46 = vector.shape_cast %45 : vector<8x1x64xf32> to vector<8x64xf32>
    %c0_28 = arith.constant 0 : index
    %c4 = arith.constant 4 : index
    %c0_29 = arith.constant 0 : index
    %47 = vector.load %arg11[%c0_28, %c4, %c0_29] : memref<8x24x64xf32, #tpu.memory_space<vmem>>, vector<8x1x64xf32>
    %48 = vector.shape_cast %47 : vector<8x1x64xf32> to vector<8x64xf32>
    %c0_30 = arith.constant 0 : index
    %c5 = arith.constant 5 : index
    %c0_31 = arith.constant 0 : index
    %49 = vector.load %arg11[%c0_30, %c5, %c0_31] : memref<8x24x64xf32, #tpu.memory_space<vmem>>, vector<8x1x64xf32>
    %50 = vector.shape_cast %49 : vector<8x1x64xf32> to vector<8x64xf32>
    %c0_32 = arith.constant 0 : index
    %c6 = arith.constant 6 : index
    %c0_33 = arith.constant 0 : index
    %51 = vector.load %arg11[%c0_32, %c6, %c0_33] : memref<8x24x64xf32, #tpu.memory_space<vmem>>, vector<8x1x64xf32>
    %52 = vector.shape_cast %51 : vector<8x1x64xf32> to vector<8x64xf32>
    %c0_34 = arith.constant 0 : index
    %c7 = arith.constant 7 : index
    %c0_35 = arith.constant 0 : index
    %53 = vector.load %arg11[%c0_34, %c7, %c0_35] : memref<8x24x64xf32, #tpu.memory_space<vmem>>, vector<8x1x64xf32>
    %54 = vector.shape_cast %53 : vector<8x1x64xf32> to vector<8x64xf32>
    %c0_36 = arith.constant 0 : index
    %c8 = arith.constant 8 : index
    %c0_37 = arith.constant 0 : index
    %55 = vector.load %arg11[%c0_36, %c8, %c0_37] : memref<8x24x64xf32, #tpu.memory_space<vmem>>, vector<8x1x64xf32>
    %56 = vector.shape_cast %55 : vector<8x1x64xf32> to vector<8x64xf32>
    %c0_38 = arith.constant 0 : index
    %c9 = arith.constant 9 : index
    %c0_39 = arith.constant 0 : index
    %57 = vector.load %arg11[%c0_38, %c9, %c0_39] : memref<8x24x64xf32, #tpu.memory_space<vmem>>, vector<8x1x64xf32>
    %58 = vector.shape_cast %57 : vector<8x1x64xf32> to vector<8x64xf32>
    %c0_40 = arith.constant 0 : index
    %c10 = arith.constant 10 : index
    %c0_41 = arith.constant 0 : index
    %59 = vector.load %arg11[%c0_40, %c10, %c0_41] : memref<8x24x64xf32, #tpu.memory_space<vmem>>, vector<8x1x64xf32>
    %60 = vector.shape_cast %59 : vector<8x1x64xf32> to vector<8x64xf32>
    %c0_42 = arith.constant 0 : index
    %c11 = arith.constant 11 : index
    %c0_43 = arith.constant 0 : index
    %61 = vector.load %arg11[%c0_42, %c11, %c0_43] : memref<8x24x64xf32, #tpu.memory_space<vmem>>, vector<8x1x64xf32>
    %62 = vector.shape_cast %61 : vector<8x1x64xf32> to vector<8x64xf32>
    %c0_44 = arith.constant 0 : index
    %c12 = arith.constant 12 : index
    %c0_45 = arith.constant 0 : index
    %63 = vector.load %arg11[%c0_44, %c12, %c0_45] : memref<8x24x64xf32, #tpu.memory_space<vmem>>, vector<8x1x64xf32>
    %64 = vector.shape_cast %63 : vector<8x1x64xf32> to vector<8x64xf32>
    %c0_46 = arith.constant 0 : index
    %c13 = arith.constant 13 : index
    %c0_47 = arith.constant 0 : index
    %65 = vector.load %arg11[%c0_46, %c13, %c0_47] : memref<8x24x64xf32, #tpu.memory_space<vmem>>, vector<8x1x64xf32>
    %66 = vector.shape_cast %65 : vector<8x1x64xf32> to vector<8x64xf32>
    %c0_48 = arith.constant 0 : index
    %c14 = arith.constant 14 : index
    %c0_49 = arith.constant 0 : index
    %67 = vector.load %arg11[%c0_48, %c14, %c0_49] : memref<8x24x64xf32, #tpu.memory_space<vmem>>, vector<8x1x64xf32>
    %68 = vector.shape_cast %67 : vector<8x1x64xf32> to vector<8x64xf32>
    %c0_50 = arith.constant 0 : index
    %c15 = arith.constant 15 : index
    %c0_51 = arith.constant 0 : index
    %69 = vector.load %arg11[%c0_50, %c15, %c0_51] : memref<8x24x64xf32, #tpu.memory_space<vmem>>, vector<8x1x64xf32>
    %70 = vector.shape_cast %69 : vector<8x1x64xf32> to vector<8x64xf32>
    %c0_52 = arith.constant 0 : index
    %c16 = arith.constant 16 : index
    %c0_53 = arith.constant 0 : index
    %71 = vector.load %arg11[%c0_52, %c16, %c0_53] : memref<8x24x64xf32, #tpu.memory_space<vmem>>, vector<8x1x64xf32>
    %72 = vector.shape_cast %71 : vector<8x1x64xf32> to vector<8x64xf32>
    %c0_54 = arith.constant 0 : index
    %c17 = arith.constant 17 : index
    %c0_55 = arith.constant 0 : index
    %73 = vector.load %arg11[%c0_54, %c17, %c0_55] : memref<8x24x64xf32, #tpu.memory_space<vmem>>, vector<8x1x64xf32>
    %74 = vector.shape_cast %73 : vector<8x1x64xf32> to vector<8x64xf32>
    %c0_56 = arith.constant 0 : index
    %c18 = arith.constant 18 : index
    %c0_57 = arith.constant 0 : index
    %75 = vector.load %arg11[%c0_56, %c18, %c0_57] : memref<8x24x64xf32, #tpu.memory_space<vmem>>, vector<8x1x64xf32>
    %76 = vector.shape_cast %75 : vector<8x1x64xf32> to vector<8x64xf32>
    %c0_58 = arith.constant 0 : index
    %c19 = arith.constant 19 : index
    %c0_59 = arith.constant 0 : index
    %77 = vector.load %arg11[%c0_58, %c19, %c0_59] : memref<8x24x64xf32, #tpu.memory_space<vmem>>, vector<8x1x64xf32>
    %78 = vector.shape_cast %77 : vector<8x1x64xf32> to vector<8x64xf32>
    %79 = tpu.concatenate %40, %42, %44, %46, %48, %50, %52, %54, %56, %58, %60, %62, %64, %66, %68, %70 in 1 : vector<8x64xf32>, vector<8x64xf32>, vector<8x64xf32>, vector<8x64xf32>, vector<8x64xf32>, vector<8x64xf32>, vector<8x64xf32>, vector<8x64xf32>, vector<8x64xf32>, vector<8x64xf32>, vector<8x64xf32>, vector<8x64xf32>, vector<8x64xf32>, vector<8x64xf32>, vector<8x64xf32>, vector<8x64xf32> -> vector<8x1024xf32>
    %80 = tpu.concatenate %72, %74, %76, %78 in 1 : vector<8x64xf32>, vector<8x64xf32>, vector<8x64xf32>, vector<8x64xf32> -> vector<8x256xf32>
    %81 = tpu.concatenate %79, %80 in 1 : vector<8x1024xf32>, vector<8x256xf32> -> vector<8x1280xf32>
    %82 = arith.truncf %81 : vector<8x1280xf32> to vector<8x1280xbf16>
    %c0_60 = arith.constant 0 : index
    %c0_61 = arith.constant 0 : index
    %83 = vector.load %arg6[%c0_60, %c0_61] : memref<1280x128xbf16, #tpu.memory_space<vmem>>, vector<1280x128xbf16>
    %cst_62 = arith.constant dense<0.000000e+00> : vector<8x128xf32>
    %84 = tpu.matmul %82, %83, %cst_62 {dimension_numbers = #tpu.dot_dimension_numbers<[1], [0], [0], [1], [0, 0, 1, 1], [], []>} : vector<8x1280xbf16>, vector<1280x128xbf16>, vector<8x128xf32> -> vector<8x128xf32>
    %c0_63 = arith.constant 0 : index
    %c0_64 = arith.constant 0 : index
    %85 = vector.load %arg7[%c0_63, %c0_64] : memref<1x128xf32, #tpu.memory_space<vmem>>, vector<1x128xf32>
    %86 = vector.broadcast %85 : vector<1x128xf32> to vector<8x128xf32>
    %87 = arith.addf %84, %86 : vector<8x128xf32>
    %cst_65 = arith.constant dense<0.000000e+00> : vector<8xf32>
    %88 = vector.multi_reduction <add>, %87, %cst_65 [1] : vector<8x128xf32> to vector<8xf32>
    %89 = vector.shape_cast %88 : vector<8xf32> to vector<8x1xf32>
    %cst_66 = arith.constant 1.280000e+02 : f32
    %90 = vector.broadcast %cst_66 : f32 to vector<8x1xf32>
    %91 = arith.divf %89, %90 : vector<8x1xf32>
    %92 = vector.broadcast %91 : vector<8x1xf32> to vector<8x128xf32>
    %93 = arith.subf %87, %92 : vector<8x128xf32>
    %94 = arith.mulf %93, %93 : vector<8x128xf32>
    %cst_67 = arith.constant dense<0.000000e+00> : vector<8xf32>
    %95 = vector.multi_reduction <add>, %94, %cst_67 [1] : vector<8x128xf32> to vector<8xf32>
    %96 = vector.shape_cast %95 : vector<8xf32> to vector<8x1xf32>
    %cst_68 = arith.constant 1.280000e+02 : f32
    %97 = vector.broadcast %cst_68 : f32 to vector<8x1xf32>
    %98 = arith.divf %96, %97 : vector<8x1xf32>
    %99 = vector.broadcast %91 : vector<8x1xf32> to vector<8x128xf32>
    %100 = arith.subf %87, %99 : vector<8x128xf32>
    %cst_69 = arith.constant 9.99999974E-6 : f32
    %101 = vector.broadcast %cst_69 : f32 to vector<8x1xf32>
    %102 = arith.addf %98, %101 : vector<8x1xf32>
    %103 = math.rsqrt %102 : vector<8x1xf32>
    %104 = vector.broadcast %103 : vector<8x1xf32> to vector<8x128xf32>
    %105 = arith.mulf %100, %104 : vector<8x128xf32>
    %c0_70 = arith.constant 0 : index
    %c0_71 = arith.constant 0 : index
    %106 = vector.load %arg8[%c0_70, %c0_71] : memref<1x128xf32, #tpu.memory_space<vmem>>, vector<1x128xf32>
    %107 = vector.broadcast %106 : vector<1x128xf32> to vector<8x128xf32>
    %108 = arith.mulf %105, %107 : vector<8x128xf32>
    %c0_72 = arith.constant 0 : index
    %c0_73 = arith.constant 0 : index
    %109 = vector.load %arg9[%c0_72, %c0_73] : memref<1x128xf32, #tpu.memory_space<vmem>>, vector<1x128xf32>
    %110 = vector.broadcast %109 : vector<1x128xf32> to vector<8x128xf32>
    %111 = arith.addf %108, %110 : vector<8x128xf32>
    %c0_74 = arith.constant 0 : index
    %c0_75 = arith.constant 0 : index
    %112 = vector.load %arg10[%c0_74, %c0_75] : memref<8x128xf32, #tpu.memory_space<vmem>>, vector<8x128xf32>
    tpu.vector_store %arg10[%c0_74, %c0_75], %111 {strides = array<i32>} : memref<8x128xf32, #tpu.memory_space<vmem>>, vector<8x128xf32>,
    return
  }
  func.func @transform_0(%arg0: i32) -> (i32, i32, i32) {
    %c0_i32 = arith.constant 0 : i32
    %c0_i32_0 = arith.constant 0 : i32
    %c0_i32_1 = arith.constant 0 : i32
    return %arg0, %c0_i32, %c0_i32_0 : i32, i32, i32
  }
  func.func @transform_1(%arg0: i32) -> (i32, i32) {
    %c0_i32 = arith.constant 0 : i32
    %c0_i32_0 = arith.constant 0 : i32
    %c0_i32_1 = arith.constant 0 : i32
    return %c0_i32, %c0_i32_0 : i32, i32
  }
  func.func @transform_2(%arg0: i32) -> (i32, i32) {
    %c0_i32 = arith.constant 0 : i32
    %c0_i32_0 = arith.constant 0 : i32
    %c0_i32_1 = arith.constant 0 : i32
    return %c0_i32, %c0_i32_0 : i32, i32
  }
  func.func @transform_3(%arg0: i32) -> (i32, i32) {
    %c0_i32 = arith.constant 0 : i32
    %c0_i32_0 = arith.constant 0 : i32
    %c0_i32_1 = arith.constant 0 : i32
    return %c0_i32, %c0_i32_0 : i32, i32
  }
  func.func @transform_4(%arg0: i32) -> (i32, i32) {
    %c0_i32 = arith.constant 0 : i32
    %c0_i32_0 = arith.constant 0 : i32
    %c0_i32_1 = arith.constant 0 : i32
    return %c0_i32, %c0_i32_0 : i32, i32
  }
  func.func @transform_5(%arg0: i32) -> (i32, i32) {
    %c0_i32 = arith.constant 0 : i32
    %c0_i32_0 = arith.constant 0 : i32
    %c0_i32_1 = arith.constant 0 : i32
    return %c0_i32, %c0_i32_0 : i32, i32
  }
  func.func @transform_6(%arg0: i32) -> (i32, i32) {
    %c0_i32 = arith.constant 0 : i32
    %c0_i32_0 = arith.constant 0 : i32
    %c0_i32_1 = arith.constant 0 : i32
    return %c0_i32, %c0_i32_0 : i32, i32
  }
  func.func @transform_7(%arg0: i32) -> (i32, i32) {
    %c0_i32 = arith.constant 0 : i32
    %c0_i32_0 = arith.constant 0 : i32
    %c0_i32_1 = arith.constant 0 : i32
    return %c0_i32, %c0_i32_0 : i32, i32
  }
  func.func @transform_8(%arg0: i32) -> (i32, i32) {
    %c0_i32 = arith.constant 0 : i32
    %c0_i32_0 = arith.constant 0 : i32
    %c0_i32_1 = arith.constant 0 : i32
    return %c0_i32, %c0_i32_0 : i32, i32
  }
  func.func @transform_9(%arg0: i32) -> (i32, i32) {
    %c0_i32 = arith.constant 0 : i32
    %c0_i32_0 = arith.constant 0 : i32
    return %arg0, %c0_i32 : i32, i32
  }
}

</mosaic_0001>

<llo_original>
// kernel: tpu_custom_call.1
$region0: #{tpu_custom_call.1}
  #allocation0 [shape = 'u32[]', space=smem, size = 0x4, offset = 0x4, fixed_abs, tag = 'smem constant byte address 0x4 - core index']
  #allocation1 [shape = 'u32[144,128]{1,0:T(1,128)}', space=vmem, size = 0x12000, scoped, tag = 'internal scratch']
  #allocation2 [shape = 'f32[8,24,64]{2,1,0:T(8,128)}', space=vmem, size = 0x18000, scoped, tag = 'scratch operand']
  %s0 = inlined_call_operand.vmem [shape: f32[8,24,64], index: 0, kind: input, shape index: {}]
  %s1 = inlined_call_operand.vmem [shape: bf16[192,128], index: 1, kind: input, shape index: {}]
  %s2 = inlined_call_operand.vmem [shape: f32[1,128], index: 2, kind: input, shape index: {}]
  %s3 = inlined_call_operand.vmem [shape: bf16[384,64], index: 3, kind: input, shape index: {}]
  %s4 = inlined_call_operand.vmem [shape: f32[1,64], index: 4, kind: input, shape index: {}]
  %s5 = inlined_call_operand.hbm [shape: bf16[1280,128], index: 5, kind: input, shape index: {}]
  %s6 = inlined_call_operand.vmem [shape: f32[1,128], index: 6, kind: input, shape index: {}]
  %s7 = inlined_call_operand.vmem [shape: f32[1,128], index: 7, kind: input, shape index: {}]
  %s8 = inlined_call_operand.vmem [shape: f32[1,128], index: 8, kind: input, shape index: {}]
  %s9 = inlined_call_operand.hbm [shape: f32[8,128], index: 9, kind: output, shape index: {}]
  %s10 = sld [smem:[#allocation0]]
  $region50: #{tpu_custom_call.1} parent=0
    _
  %s12 = ssub.s32 1, %s10
  %s13 = scalar_select 0, %s12, %s10
  $region1: #{tpu_custom_call.1} parent=0
    #allocation3 [shape = 'u8[327680]{0}', space=vmem, size = 0x50000, scoped, tag = 'input window, operand 5, single buffered']
    #allocation4 [shape = 's32[1]{0}', space=sflag, size = 0x4, scoped, tag = 'scoped memory for tpu_custom_call.1']
    #allocation5 [shape = 's32[1]{0}', space=sflag, size = 0x4, scoped, tag = 'scoped memory for tpu_custom_call.1']
    #allocation6 [shape = 'u8[4096]{0}', space=vmem, size = 0x1000, scoped, tag = 'output window, operand 0, single buffered']
    %14 = vsyncpa [#allocation4], 0
    %15 = vsyncpa [#allocation5], 0
    // Predicated region
    $region2: #{tpu_custom_call.1} parent=1 // pred_check
      _
    $region3: #{tpu_custom_call.1} parent=1 // pred_check_branch
      %17 = sbr.rel (0) target = $region5
    $region4: #{tpu_custom_call.1} parent=1 // pred_region
      _
    $region5: #{tpu_custom_call.1} parent=1 // pred_fallthru
      _
    // Predicated region
    $region6: #{tpu_custom_call.1} parent=1 // pred_check
      _
    $region7: #{tpu_custom_call.1} parent=1 // pred_check_branch
      %19 = sbr.rel (0) target = $region9
    $region8: #{tpu_custom_call.1} parent=1 // pred_region
      _
    $region9: #{tpu_custom_call.1} parent=1 // pred_fallthru
      _
    // Predicated region
    $region10: #{tpu_custom_call.1} parent=1 // pred_check
      _
    $region11: #{tpu_custom_call.1} parent=1 // pred_check_branch
      %21 = sbr.rel (0) target = $region13
    $region12: #{tpu_custom_call.1} parent=1 // pred_region
      _
    $region13: #{tpu_custom_call.1} parent=1 // pred_fallthru
      _
    // Predicated region
    $region14: #{tpu_custom_call.1} parent=1 // pred_check
      _
    $region15: #{tpu_custom_call.1} parent=1 // pred_check_branch
      %23 = sbr.rel (0) target = $region17
    $region16: #{tpu_custom_call.1} parent=1 // pred_region
      _
    $region17: #{tpu_custom_call.1} parent=1 // pred_fallthru
      _
    // Predicated region
    $region18: #{tpu_custom_call.1} parent=1 // pred_check
      _
    $region19: #{tpu_custom_call.1} parent=1 // pred_check_branch
      %25 = sbr.rel (0) target = $region21
    $region20: #{tpu_custom_call.1} parent=1 // pred_region
      _
    $region21: #{tpu_custom_call.1} parent=1 // pred_fallthru
      _
    // Predicated region
    $region22: #{tpu_custom_call.1} parent=1 // pred_check
      _
    $region23: #{tpu_custom_call.1} parent=1 // pred_check_branch
      %27 = sbr.rel (0) target = $region25
    $region24: #{tpu_custom_call.1} parent=1 // pred_region
      %s29 = ssub.s32 10240, 10240
      %30 = vsyncadd [#allocation4], %s29
      %s31 = sshll.u32 [#allocation3], 4
      %s32 = int_to_ptr.vmem [resolvable:$true] %s31
      %37 = dma.hbm_to_vmem [thread:$0]  %s5, 10240, %s32, [#allocation4], 64, 64, 4
    $region25: #{tpu_custom_call.1} parent=1 // pred_fallthru
      _
    // Predicated region
    $region26: #{tpu_custom_call.1} parent=1 // pred_check
      _
    $region27: #{tpu_custom_call.1} parent=1 // pred_check_branch
      %39 = sbr.rel (0) target = $region29
    $region28: #{tpu_custom_call.1} parent=1 // pred_region
      _
    $region29: #{tpu_custom_call.1} parent=1 // pred_fallthru
      _
    // Predicated region
    $region30: #{tpu_custom_call.1} parent=1 // pred_check
      _
    $region31: #{tpu_custom_call.1} parent=1 // pred_check_branch
      %41 = sbr.rel (0) target = $region33
    $region32: #{tpu_custom_call.1} parent=1 // pred_region
      _
    $region33: #{tpu_custom_call.1} parent=1 // pred_fallthru
      _
    // Predicated region
    $region34: #{tpu_custom_call.1} parent=1 // pred_check
      _
    $region35: #{tpu_custom_call.1} parent=1 // pred_check_branch
      %43 = sbr.rel (0) target = $region37
    $region36: #{tpu_custom_call.1} parent=1 // pred_region
      _
    $region37: #{tpu_custom_call.1} parent=1 // pred_fallthru
      _
    // Predicated region
    $region38: #{tpu_custom_call.1} parent=1 // pred_check
      _
    $region39: #{tpu_custom_call.1} parent=1 // pred_check_branch
      %45 = sbr.rel (0) target = $region41
    $region40: #{tpu_custom_call.1} parent=1 // pred_region
      %46 = dma.done [#allocation4], 10240
    $region41: #{tpu_custom_call.1} parent=1 // pred_fallthru
      _
    %v48 = vld [vmem:[%s0] sm:$0xff]
    %v49 = vld [vmem:[%s0 + $0x8] sm:$0xff]
    %v50 = vld [vmem:[%s0 + $0x10] sm:$0xff]
    %v51 = vld [vmem:[%s0 + $0x18] sm:$0xff]
    %v52 = vld [vmem:[%s0 + $0x20] sm:$0xff]
    %v53 = vld [vmem:[%s0 + $0x28] sm:$0xff]
    %v54 = vld [vmem:[%s0 + $0x30] sm:$0xff]
    %v55 = vld [vmem:[%s0 + $0x38] sm:$0xff]
    %v56 = vld [vmem:[%s0 + $0x40] sm:$0xff]
    %v57 = vld [vmem:[%s0 + $0x48] sm:$0xff]
    %v58 = vld [vmem:[%s0 + $0x50] sm:$0xff]
    %v59 = vld [vmem:[%s0 + $0x58] sm:$0xff]
    %v60 = vld [vmem:[%s0 + $0x60] sm:$0xff]
    %v61 = vld [vmem:[%s0 + $0x68] sm:$0xff]
    %v62 = vld [vmem:[%s0 + $0x70] sm:$0xff]
    %v63 = vld [vmem:[%s0 + $0x78] sm:$0xff]
    %v64 = vld [vmem:[%s0 + $0x80] sm:$0xff]
    %v65 = vld [vmem:[%s0 + $0x88] sm:$0xff]
    %v66 = vld [vmem:[%s0 + $0x90] sm:$0xff]
    %v67 = vld [vmem:[%s0 + $0x98] sm:$0xff]
    %v68 = vld [vmem:[%s0 + $0xa0] sm:$0xff]
    %v69 = vld [vmem:[%s0 + $0xa8] sm:$0xff]
    %v70 = vld [vmem:[%s0 + $0xb0] sm:$0xff]
    %v71 = vld [vmem:[%s0 + $0xb8] sm:$0xff]
    %v72 = vlaneseq
    %v73 = vshrl.u32 %v72, 7
    %v74 = vadd.s32 %v73, 8
    %v75 = vadd.s32 %v73, 16
    %v76 = vadd.s32 %v73, 24
    %v77 = vadd.s32 %v73, 32
    %v78 = vadd.s32 %v73, 40
    %v79 = vadd.s32 %v73, 48
    %v80 = vadd.s32 %v73, 56
    %v81 = vadd.s32 %v73, 64
    %v82 = vadd.s32 %v73, 72
    %v83 = vadd.s32 %v73, 80
    %v84 = vadd.s32 %v73, 88
    %v85 = vadd.s32 %v73, 96
    %v86 = vadd.s32 %v73, 104
    %v87 = vadd.s32 %v73, 112
    %v88 = vadd.s32 %v73, 120
    %v89 = vadd.s32 %v73, 128
    %v90 = vadd.s32 %v73, 136
    %v91 = vadd.s32 %v73, 144
    %v92 = vadd.s32 %v73, 152
    %v93 = vadd.s32 %v73, 160
    %v94 = vadd.s32 %v73, 168
    %v95 = vadd.s32 %v73, 176
    %v96 = vadd.s32 %v73, 184
    %vm97 = vcmp.lt.s32.totalorder %v73, 0
    %v98 = vsub.s32 0, %v73
    %v99 = vsel %vm97, %v98, %v73
    %v100 = vmul.u32.u64.compose %v99, 2863311531
    %v101 = vextract.low.u32 %v100
    %v102 = vextract.high.u32 %v100
    %v103 = vshrl.u32 %v102, 4
    %v104 = vmul.u32 %v103, 24
    %v105 = vsub.s32 %v99, %v104
    %v106 = vsub.s32 0, %v105
    %v107 = vsel %vm97, %v106, %v105
    %vm108 = vcmp.lt.s32.totalorder %v74, 0
    %v109 = vsub.s32 0, %v74
    %v110 = vsel %vm108, %v109, %v74
    %v111 = vmul.u32.u64.compose %v110, 2863311531
    %v112 = vextract.low.u32 %v111
    %v113 = vextract.high.u32 %v111
    %v114 = vshrl.u32 %v113, 4
    %v115 = vmul.u32 %v114, 24
    %v116 = vsub.s32 %v110, %v115
    %v117 = vsub.s32 0, %v116
    %v118 = vsel %vm108, %v117, %v116
    %vm119 = vcmp.lt.s32.totalorder %v75, 0
    %v120 = vsub.s32 0, %v75
    %v121 = vsel %vm119, %v120, %v75
    %v122 = vmul.u32.u64.compose %v121, 2863311531
    %v123 = vextract.low.u32 %v122
    %v124 = vextract.high.u32 %v122
    %v125 = vshrl.u32 %v124, 4
    %v126 = vmul.u32 %v125, 24
    %v127 = vsub.s32 %v121, %v126
    %v128 = vsub.s32 0, %v127
    %v129 = vsel %vm119, %v128, %v127
    %vm130 = vcmp.lt.s32.totalorder %v76, 0
    %v131 = vsub.s32 0, %v76
    %v132 = vsel %vm130, %v131, %v76
    %v133 = vmul.u32.u64.compose %v132, 2863311531
    %v134 = vextract.low.u32 %v133
    %v135 = vextract.high.u32 %v133
    %v136 = vshrl.u32 %v135, 4
    %v137 = vmul.u32 %v136, 24
    %v138 = vsub.s32 %v132, %v137
    %v139 = vsub.s32 0, %v138
    %v140 = vsel %vm130, %v139, %v138
    %vm141 = vcmp.lt.s32.totalorder %v77, 0
    %v142 = vsub.s32 0, %v77
    %v143 = vsel %vm141, %v142, %v77
    %v144 = vmul.u32.u64.compose %v143, 2863311531
    %v145 = vextract.low.u32 %v144
    %v146 = vextract.high.u32 %v144
    %v147 = vshrl.u32 %v146, 4
    %v148 = vmul.u32 %v147, 24
    %v149 = vsub.s32 %v143, %v148
    %v150 = vsub.s32 0, %v149
    %v151 = vsel %vm141, %v150, %v149
    %vm152 = vcmp.lt.s32.totalorder %v78, 0
    %v153 = vsub.s32 0, %v78
    %v154 = vsel %vm152, %v153, %v78
    %v155 = vmul.u32.u64.compose %v154, 2863311531
    %v156 = vextract.low.u32 %v155
    %v157 = vextract.high.u32 %v155
    %v158 = vshrl.u32 %v157, 4
    %v159 = vmul.u32 %v158, 24
    %v160 = vsub.s32 %v154, %v159
    %v161 = vsub.s32 0, %v160
    %v162 = vsel %vm152, %v161, %v160
    %vm163 = vcmp.lt.s32.totalorder %v79, 0
    %v164 = vsub.s32 0, %v79
    %v165 = vsel %vm163, %v164, %v79
    %v166 = vmul.u32.u64.compose %v165, 2863311531
    %v167 = vextract.low.u32 %v166
    %v168 = vextract.high.u32 %v166
    %v169 = vshrl.u32 %v168, 4
    %v170 = vmul.u32 %v169, 24
    %v171 = vsub.s32 %v165, %v170
    %v172 = vsub.s32 0, %v171
    %v173 = vsel %vm163, %v172, %v171
    %vm174 = vcmp.lt.s32.totalorder %v80, 0
    %v175 = vsub.s32 0, %v80
    %v176 = vsel %vm174, %v175, %v80
    %v177 = vmul.u32.u64.compose %v176, 2863311531
    %v178 = vextract.low.u32 %v177
    %v179 = vextract.high.u32 %v177
    %v180 = vshrl.u32 %v179, 4
    %v181 = vmul.u32 %v180, 24
    %v182 = vsub.s32 %v176, %v181
    %v183 = vsub.s32 0, %v182
    %v184 = vsel %vm174, %v183, %v182
    %vm185 = vcmp.lt.s32.totalorder %v81, 0
    %v186 = vsub.s32 0, %v81
    %v187 = vsel %vm185, %v186, %v81
    %v188 = vmul.u32.u64.compose %v187, 2863311531
    %v189 = vextract.low.u32 %v188
    %v190 = vextract.high.u32 %v188
    %v191 = vshrl.u32 %v190, 4
    %v192 = vmul.u32 %v191, 24
    %v193 = vsub.s32 %v187, %v192
    %v194 = vsub.s32 0, %v193
    %v195 = vsel %vm185, %v194, %v193
    %vm196 = vcmp.lt.s32.totalorder %v82, 0
    %v197 = vsub.s32 0, %v82
    %v198 = vsel %vm196, %v197, %v82
    %v199 = vmul.u32.u64.compose %v198, 2863311531
    %v200 = vextract.low.u32 %v199
    %v201 = vextract.high.u32 %v199
    %v202 = vshrl.u32 %v201, 4
    %v203 = vmul.u32 %v202, 24
    %v204 = vsub.s32 %v198, %v203
    %v205 = vsub.s32 0, %v204
    %v206 = vsel %vm196, %v205, %v204
    %vm207 = vcmp.lt.s32.totalorder %v83, 0
    %v208 = vsub.s32 0, %v83
    %v209 = vsel %vm207, %v208, %v83
    %v210 = vmul.u32.u64.compose %v209, 2863311531
    %v211 = vextract.low.u32 %v210
    %v212 = vextract.high.u32 %v210
    %v213 = vshrl.u32 %v212, 4
    %v214 = vmul.u32 %v213, 24
    %v215 = vsub.s32 %v209, %v214
    %v216 = vsub.s32 0, %v215
    %v217 = vsel %vm207, %v216, %v215
    %vm218 = vcmp.lt.s32.totalorder %v84, 0
    %v219 = vsub.s32 0, %v84
    %v220 = vsel %vm218, %v219, %v84
    %v221 = vmul.u32.u64.compose %v220, 2863311531
    %v222 = vextract.low.u32 %v221
    %v223 = vextract.high.u32 %v221
    %v224 = vshrl.u32 %v223, 4
    %v225 = vmul.u32 %v224, 24
    %v226 = vsub.s32 %v220, %v225
    %v227 = vsub.s32 0, %v226
    %v228 = vsel %vm218, %v227, %v226
    %vm229 = vcmp.lt.s32.totalorder %v85, 0
    %v230 = vsub.s32 0, %v85
    %v231 = vsel %vm229, %v230, %v85
    %v232 = vmul.u32.u64.compose %v231, 2863311531
    %v233 = vextract.low.u32 %v232
    %v234 = vextract.high.u32 %v232
    %v235 = vshrl.u32 %v234, 4
    %v236 = vmul.u32 %v235, 24
    %v237 = vsub.s32 %v231, %v236
    %v238 = vsub.s32 0, %v237
    %v239 = vsel %vm229, %v238, %v237
    %vm240 = vcmp.lt.s32.totalorder %v86, 0
    %v241 = vsub.s32 0, %v86
    %v242 = vsel %vm240, %v241, %v86
    %v243 = vmul.u32.u64.compose %v242, 2863311531
    %v244 = vextract.low.u32 %v243
    %v245 = vextract.high.u32 %v243
    %v246 = vshrl.u32 %v245, 4
    %v247 = vmul.u32 %v246, 24
    %v248 = vsub.s32 %v242, %v247
    %v249 = vsub.s32 0, %v248
    %v250 = vsel %vm240, %v249, %v248
    %vm251 = vcmp.lt.s32.totalorder %v87, 0
    %v252 = vsub.s32 0, %v87
    %v253 = vsel %vm251, %v252, %v87
    %v254 = vmul.u32.u64.compose %v253, 2863311531
    %v255 = vextract.low.u32 %v254
    %v256 = vextract.high.u32 %v254
    %v257 = vshrl.u32 %v256, 4
    %v258 = vmul.u32 %v257, 24
    %v259 = vsub.s32 %v253, %v258
    %v260 = vsub.s32 0, %v259
    %v261 = vsel %vm251, %v260, %v259
    %vm262 = vcmp.lt.s32.totalorder %v88, 0
    %v263 = vsub.s32 0, %v88
    %v264 = vsel %vm262, %v263, %v88
    %v265 = vmul.u32.u64.compose %v264, 2863311531
    %v266 = vextract.low.u32 %v265
    %v267 = vextract.high.u32 %v265
    %v268 = vshrl.u32 %v267, 4
    %v269 = vmul.u32 %v268, 24
    %v270 = vsub.s32 %v264, %v269
    %v271 = vsub.s32 0, %v270
    %v272 = vsel %vm262, %v271, %v270
    %vm273 = vcmp.lt.s32.totalorder %v89, 0
    %v274 = vsub.s32 0, %v89
    %v275 = vsel %vm273, %v274, %v89
    %v276 = vmul.u32.u64.compose %v275, 2863311531
    %v277 = vextract.low.u32 %v276
    %v278 = vextract.high.u32 %v276
    %v279 = vshrl.u32 %v278, 4
    %v280 = vmul.u32 %v279, 24
    %v281 = vsub.s32 %v275, %v280
    %v282 = vsub.s32 0, %v281
    %v283 = vsel %vm273, %v282, %v281
    %vm284 = vcmp.lt.s32.totalorder %v90, 0
    %v285 = vsub.s32 0, %v90
    %v286 = vsel %vm284, %v285, %v90
    %v287 = vmul.u32.u64.compose %v286, 2863311531
    %v288 = vextract.low.u32 %v287
    %v289 = vextract.high.u32 %v287
    %v290 = vshrl.u32 %v289, 4
    %v291 = vmul.u32 %v290, 24
    %v292 = vsub.s32 %v286, %v291
    %v293 = vsub.s32 0, %v292
    %v294 = vsel %vm284, %v293, %v292
    %vm295 = vcmp.lt.s32.totalorder %v91, 0
    %v296 = vsub.s32 0, %v91
    %v297 = vsel %vm295, %v296, %v91
    %v298 = vmul.u32.u64.compose %v297, 2863311531
    %v299 = vextract.low.u32 %v298
    %v300 = vextract.high.u32 %v298
    %v301 = vshrl.u32 %v300, 4
    %v302 = vmul.u32 %v301, 24
    %v303 = vsub.s32 %v297, %v302
    %v304 = vsub.s32 0, %v303
    %v305 = vsel %vm295, %v304, %v303
    %vm306 = vcmp.lt.s32.totalorder %v92, 0
    %v307 = vsub.s32 0, %v92
    %v308 = vsel %vm306, %v307, %v92
    %v309 = vmul.u32.u64.compose %v308, 2863311531
    %v310 = vextract.low.u32 %v309
    %v311 = vextract.high.u32 %v309
    %v312 = vshrl.u32 %v311, 4
    %v313 = vmul.u32 %v312, 24
    %v314 = vsub.s32 %v308, %v313
    %v315 = vsub.s32 0, %v314
    %v316 = vsel %vm306, %v315, %v314
    %vm317 = vcmp.lt.s32.totalorder %v93, 0
    %v318 = vsub.s32 0, %v93
    %v319 = vsel %vm317, %v318, %v93
    %v320 = vmul.u32.u64.compose %v319, 2863311531
    %v321 = vextract.low.u32 %v320
    %v322 = vextract.high.u32 %v320
    %v323 = vshrl.u32 %v322, 4
    %v324 = vmul.u32 %v323, 24
    %v325 = vsub.s32 %v319, %v324
    %v326 = vsub.s32 0, %v325
    %v327 = vsel %vm317, %v326, %v325
    %vm328 = vcmp.lt.s32.totalorder %v94, 0
    %v329 = vsub.s32 0, %v94
    %v330 = vsel %vm328, %v329, %v94
    %v331 = vmul.u32.u64.compose %v330, 2863311531
    %v332 = vextract.low.u32 %v331
    %v333 = vextract.high.u32 %v331
    %v334 = vshrl.u32 %v333, 4
    %v335 = vmul.u32 %v334, 24
    %v336 = vsub.s32 %v330, %v335
    %v337 = vsub.s32 0, %v336
    %v338 = vsel %vm328, %v337, %v336
    %vm339 = vcmp.lt.s32.totalorder %v95, 0
    %v340 = vsub.s32 0, %v95
    %v341 = vsel %vm339, %v340, %v95
    %v342 = vmul.u32.u64.compose %v341, 2863311531
    %v343 = vextract.low.u32 %v342
    %v344 = vextract.high.u32 %v342
    %v345 = vshrl.u32 %v344, 4
    %v346 = vmul.u32 %v345, 24
    %v347 = vsub.s32 %v341, %v346
    %v348 = vsub.s32 0, %v347
    %v349 = vsel %vm339, %v348, %v347
    %vm350 = vcmp.lt.s32.totalorder %v96, 0
    %v351 = vsub.s32 0, %v96
    %v352 = vsel %vm350, %v351, %v96
    %v353 = vmul.u32.u64.compose %v352, 2863311531
    %v354 = vextract.low.u32 %v353
    %v355 = vextract.high.u32 %v353
    %v356 = vshrl.u32 %v355, 4
    %v357 = vmul.u32 %v356, 24
    %v358 = vsub.s32 %v352, %v357
    %v359 = vsub.s32 0, %v358
    %v360 = vsel %vm350, %v359, %v358
    %vm361 = vcmp.lt.s32.totalorder %v107, 20
    %vm362 = vcmp.lt.s32.totalorder %v118, 20
    %vm363 = vcmp.lt.s32.totalorder %v129, 20
    %vm364 = vcmp.lt.s32.totalorder %v140, 20
    %vm365 = vcmp.lt.s32.totalorder %v151, 20
    %vm366 = vcmp.lt.s32.totalorder %v162, 20
    %vm367 = vcmp.lt.s32.totalorder %v173, 20
    %vm368 = vcmp.lt.s32.totalorder %v184, 20
    %vm369 = vcmp.lt.s32.totalorder %v195, 20
    %vm370 = vcmp.lt.s32.totalorder %v206, 20
    %vm371 = vcmp.lt.s32.totalorder %v217, 20
    %vm372 = vcmp.lt.s32.totalorder %v228, 20
    %vm373 = vcmp.lt.s32.totalorder %v239, 20
    %vm374 = vcmp.lt.s32.totalorder %v250, 20
    %vm375 = vcmp.lt.s32.totalorder %v261, 20
    %vm376 = vcmp.lt.s32.totalorder %v272, 20
    %vm377 = vcmp.lt.s32.totalorder %v283, 20
    %vm378 = vcmp.lt.s32.totalorder %v294, 20
    %vm379 = vcmp.lt.s32.totalorder %v305, 20
    %vm380 = vcmp.lt.s32.totalorder %v316, 20
    %vm381 = vcmp.lt.s32.totalorder %v327, 20
    %vm382 = vcmp.lt.s32.totalorder %v338, 20
    %vm383 = vcmp.lt.s32.totalorder %v349, 20
    %vm384 = vcmp.lt.s32.totalorder %v360, 20
    %v385 = vrot.slane %v48, 7
    %v386 = vrot.slane %v49, 7
    %v387 = vrot.slane %v50, 7
    %v388 = vrot.slane %v51, 7
    %v389 = vrot.slane %v52, 7
    %v390 = vrot.slane %v53, 7
    %v391 = vrot.slane %v54, 7
    %v392 = vrot.slane %v55, 7
    %v393 = vrot.slane %v56, 7
    %v394 = vrot.slane %v57, 7
    %v395 = vrot.slane %v58, 7
    %v396 = vrot.slane %v59, 7
    %v397 = vrot.slane %v60, 7
    %v398 = vrot.slane %v61, 7
    %v399 = vrot.slane %v62, 7
    %v400 = vrot.slane %v63, 7
    %v401 = vrot.slane %v64, 7
    %v402 = vrot.slane %v65, 7
    %v403 = vrot.slane %v66, 7
    %v404 = vrot.slane %v67, 7
    %v405 = vrot.slane %v68, 7
    %v406 = vrot.slane %v69, 7
    %v407 = vrot.slane %v70, 7
    %v408 = vrot.slane %v71, 7
    %vm409 = vcmp.lt.s32.totalorder %v73, 1
    %v410 = vsel %vm409, %v407, %v408
    %v411 = vsel %vm409, %v406, %v407
    %v412 = vsel %vm409, %v405, %v406
    %v413 = vsel %vm409, %v404, %v405
    %v414 = vsel %vm409, %v403, %v404
    %v415 = vsel %vm409, %v402, %v403
    %v416 = vsel %vm409, %v401, %v402
    %v417 = vsel %vm409, %v400, %v401
    %v418 = vsel %vm409, %v399, %v400
    %v419 = vsel %vm409, %v398, %v399
    %v420 = vsel %vm409, %v397, %v398
    %v421 = vsel %vm409, %v396, %v397
    %v422 = vsel %vm409, %v395, %v396
    %v423 = vsel %vm409, %v394, %v395
    %v424 = vsel %vm409, %v393, %v394
    %v425 = vsel %vm409, %v392, %v393
    %v426 = vsel %vm409, %v391, %v392
    %v427 = vsel %vm409, %v390, %v391
    %v428 = vsel %vm409, %v389, %v390
    %v429 = vsel %vm409, %v388, %v389
    %v430 = vsel %vm409, %v387, %v388
    %v431 = vsel %vm409, %v386, %v387
    %v432 = vsel %vm409, %v385, %v386
    %v433 = vsel %vm409, %v408, %v385
    %v434 = vrot.slane %v48, 1
    %v435 = vrot.slane %v49, 1
    %v436 = vrot.slane %v50, 1
    %v437 = vrot.slane %v51, 1
    %v438 = vrot.slane %v52, 1
    %v439 = vrot.slane %v53, 1
    %v440 = vrot.slane %v54, 1
    %v441 = vrot.slane %v55, 1
    %v442 = vrot.slane %v56, 1
    %v443 = vrot.slane %v57, 1
    %v444 = vrot.slane %v58, 1
    %v445 = vrot.slane %v59, 1
    %v446 = vrot.slane %v60, 1
    %v447 = vrot.slane %v61, 1
    %v448 = vrot.slane %v62, 1
    %v449 = vrot.slane %v63, 1
    %v450 = vrot.slane %v64, 1
    %v451 = vrot.slane %v65, 1
    %v452 = vrot.slane %v66, 1
    %v453 = vrot.slane %v67, 1
    %v454 = vrot.slane %v68, 1
    %v455 = vrot.slane %v69, 1
    %v456 = vrot.slane %v70, 1
    %v457 = vrot.slane %v71, 1
    %vm458 = vcmp.lt.s32.totalorder %v73, 7
    %v459 = vsel %vm458, %v456, %v457
    %v460 = vsel %vm458, %v455, %v456
    %v461 = vsel %vm458, %v454, %v455
    %v462 = vsel %vm458, %v453, %v454
    %v463 = vsel %vm458, %v452, %v453
    %v464 = vsel %vm458, %v451, %v452
    %v465 = vsel %vm458, %v450, %v451
    %v466 = vsel %vm458, %v449, %v450
    %v467 = vsel %vm458, %v448, %v449
    %v468 = vsel %vm458, %v447, %v448
    %v469 = vsel %vm458, %v446, %v447
    %v470 = vsel %vm458, %v445, %v446
    %v471 = vsel %vm458, %v444, %v445
    %v472 = vsel %vm458, %v443, %v444
    %v473 = vsel %vm458, %v442, %v443
    %v474 = vsel %vm458, %v441, %v442
    %v475 = vsel %vm458, %v440, %v441
    %v476 = vsel %vm458, %v439, %v440
    %v477 = vsel %vm458, %v438, %v439
    %v478 = vsel %vm458, %v437, %v438
    %v479 = vsel %vm458, %v436, %v437
    %v480 = vsel %vm458, %v435, %v436
    %v481 = vsel %vm458, %v434, %v435
    %v482 = vsel %vm458, %v457, %v434
    %v483 = vpack.c.bf16 %v432, %v433
    %v484 = vpack.c.bf16 %v430, %v431
    %v485 = vpack.c.bf16 %v428, %v429
    %v486 = vpack.c.bf16 %v426, %v427
    %v487 = vpack.c.bf16 %v424, %v425
    %v488 = vpack.c.bf16 %v422, %v423
    %v489 = vpack.c.bf16 %v420, %v421
    %v490 = vpack.c.bf16 %v418, %v419
    %v491 = vpack.c.bf16 %v416, %v417
    %v492 = vpack.c.bf16 %v414, %v415
    %v493 = vpack.c.bf16 %v412, %v413
    %v494 = vpack.c.bf16 %v410, %v411
    %v495 = vpack.c.bf16 %v49, %v48
    %v496 = vpack.c.bf16 %v51, %v50
    %v497 = vpack.c.bf16 %v53, %v52
    %v498 = vpack.c.bf16 %v55, %v54
    %v499 = vpack.c.bf16 %v57, %v56
    %v500 = vpack.c.bf16 %v59, %v58
    %v501 = vpack.c.bf16 %v61, %v60
    %v502 = vpack.c.bf16 %v63, %v62
    %v503 = vpack.c.bf16 %v65, %v64
    %v504 = vpack.c.bf16 %v67, %v66
    %v505 = vpack.c.bf16 %v69, %v68
    %v506 = vpack.c.bf16 %v71, %v70
    %v507 = vpack.c.bf16 %v480, %v481
    %v508 = vpack.c.bf16 %v478, %v479
    %v509 = vpack.c.bf16 %v476, %v477
    %v510 = vpack.c.bf16 %v474, %v475
    %v511 = vpack.c.bf16 %v472, %v473
    %v512 = vpack.c.bf16 %v470, %v471
    %v513 = vpack.c.bf16 %v468, %v469
    %v514 = vpack.c.bf16 %v466, %v467
    %v515 = vpack.c.bf16 %v464, %v465
    %v516 = vpack.c.bf16 %v462, %v463
    %v517 = vpack.c.bf16 %v460, %v461
    %v518 = vpack.c.bf16 %v482, %v459
    %531 = vrot.lane.b32.xlu0 %v495, 64
    %v532 = vpop.permute.xlu0 %531
    %533 = vrot.lane.b32.xlu0 %v496, 64
    %v534 = vpop.permute.xlu0 %533
    %535 = vrot.lane.b32.xlu0 %v497, 64
    %v536 = vpop.permute.xlu0 %535
    %537 = vrot.lane.b32.xlu0 %v498, 64
    %v538 = vpop.permute.xlu0 %537
    %539 = vrot.lane.b32.xlu0 %v499, 64
    %v540 = vpop.permute.xlu0 %539
    %541 = vrot.lane.b32.xlu0 %v500, 64
    %v542 = vpop.permute.xlu0 %541
    %543 = vrot.lane.b32.xlu0 %v501, 64
    %v544 = vpop.permute.xlu0 %543
    %545 = vrot.lane.b32.xlu0 %v502, 64
    %v546 = vpop.permute.xlu0 %545
    %547 = vrot.lane.b32.xlu0 %v503, 64
    %v548 = vpop.permute.xlu0 %547
    %549 = vrot.lane.b32.xlu0 %v504, 64
    %v550 = vpop.permute.xlu0 %549
    %551 = vrot.lane.b32.xlu0 %v505, 64
    %v552 = vpop.permute.xlu0 %551
    %553 = vrot.lane.b32.xlu0 %v506, 64
    %v554 = vpop.permute.xlu0 %553
    %vm555 = vcmask 523264
    %v558 = vsel %vm555, %v483, %v532
    %v562 = vsel %vm555, %v484, %v534
    %v566 = vsel %vm555, %v485, %v536
    %v570 = vsel %vm555, %v486, %v538
    %v574 = vsel %vm555, %v487, %v540
    %v578 = vsel %vm555, %v488, %v542
    %v582 = vsel %vm555, %v489, %v544
    %v586 = vsel %vm555, %v490, %v546
    %v590 = vsel %vm555, %v491, %v548
    %v594 = vsel %vm555, %v492, %v550
    %v598 = vsel %vm555, %v493, %v552
    %v602 = vsel %vm555, %v494, %v554
    %v604 = vld [vmem:[%s1] sm:$0xf]
    %v605 = vld [vmem:[%s1 + $0x4] sm:$0xf]
    %v606 = vld [vmem:[%s1 + $0x8] sm:$0xf]
    %v607 = vld [vmem:[%s1 + $0xc] sm:$0xf]
    %v608 = vld [vmem:[%s1 + $0x10] sm:$0xf]
    %v609 = vld [vmem:[%s1 + $0x14] sm:$0xf]
    %v610 = vld [vmem:[%s1 + $0x18] sm:$0xf]
    %v611 = vld [vmem:[%s1 + $0x1c] sm:$0xf]
    %v612 = vld [vmem:[%s1 + $0x20] sm:$0xf]
    %v613 = vld [vmem:[%s1 + $0x24] sm:$0xf]
    %v614 = vld [vmem:[%s1 + $0x28] sm:$0xf]
    %v615 = vld [vmem:[%s1 + $0x2c] sm:$0xf]
    %v616 = vld [vmem:[%s1 + $0x30] sm:$0xf]
    %v617 = vld [vmem:[%s1 + $0x34] sm:$0xf]
    %v618 = vld [vmem:[%s1 + $0x38] sm:$0xf]
    %v619 = vld [vmem:[%s1 + $0x3c] sm:$0xf]
    %v620 = vld [vmem:[%s1 + $0x40] sm:$0xf]
    %v621 = vld [vmem:[%s1 + $0x44] sm:$0xf]
    %v622 = vld [vmem:[%s1 + $0x48] sm:$0xf]
    %v623 = vld [vmem:[%s1 + $0x4c] sm:$0xf]
    %v624 = vld [vmem:[%s1 + $0x50] sm:$0xf]
    %v625 = vld [vmem:[%s1 + $0x54] sm:$0xf]
    %v626 = vld [vmem:[%s1 + $0x58] sm:$0xf]
    %v627 = vld [vmem:[%s1 + $0x5c] sm:$0xf]
    %v628 = vld [vmem:[%s2] sm:$0x1]
    %v630 = vlaneseq
    %v631 = vshrl.u32 %v630, 7
    %v632 = vsub.s32 0, %v631
    %v633 = vrot.slane %v628, %v632
    %v659 = vunpack.c.l.b16 %v604
    %v660 = vunpack.c.l.b16 %v605
    %v661 = vunpack.c.l.b16 %v606
    %v662 = vunpack.c.l.b16 %v607
    %v663 = vunpack.c.l.b16 %v608
    %v664 = vunpack.c.l.b16 %v609
    %v665 = vunpack.c.l.b16 %v610
    %v666 = vunpack.c.l.b16 %v611
    %v667 = vunpack.c.l.b16 %v612
    %v668 = vunpack.c.l.b16 %v613
    %v669 = vunpack.c.l.b16 %v614
    %v670 = vunpack.c.l.b16 %v615
    %v671 = vunpack.c.l.b16 %v616
    %v672 = vunpack.c.l.b16 %v617
    %v673 = vunpack.c.l.b16 %v618
    %v674 = vunpack.c.l.b16 %v619
    %v675 = vunpack.c.l.b16 %v620
    %v676 = vunpack.c.l.b16 %v621
    %v677 = vunpack.c.l.b16 %v622
    %v678 = vunpack.c.l.b16 %v623
    %v679 = vunpack.c.l.b16 %v624
    %v680 = vunpack.c.l.b16 %v625
    %v681 = vunpack.c.l.b16 %v626
    %v682 = vunpack.c.l.b16 %v627
    %v683 = vpack.c.b16 %v660, %v659
    %v684 = vpack.c.b16 %v662, %v661
    %v685 = vpack.c.b16 %v664, %v663
    %v686 = vpack.c.b16 %v666, %v665
    %v687 = vpack.c.b16 %v668, %v667
    %v688 = vpack.c.b16 %v670, %v669
    %v689 = vpack.c.b16 %v672, %v671
    %v690 = vpack.c.b16 %v674, %v673
    %v691 = vpack.c.b16 %v676, %v675
    %v692 = vpack.c.b16 %v678, %v677
    %v693 = vpack.c.b16 %v680, %v679
    %v694 = vpack.c.b16 %v682, %v681
    %v708 = vsel %vm555, %v507, 0
    %v711 = vsel %vm555, %v508, 0
    %v714 = vsel %vm555, %v509, 0
    %v717 = vsel %vm555, %v510, 0
    %v720 = vsel %vm555, %v511, 0
    %v723 = vsel %vm555, %v512, 0
    %v726 = vsel %vm555, %v513, 0
    %v729 = vsel %vm555, %v514, 0
    %v732 = vsel %vm555, %v515, 0
    %v735 = vsel %vm555, %v516, 0
    %v738 = vsel %vm555, %v517, 0
    %v741 = vsel %vm555, %v518, 0
    %743 = vmatprep.subr.bf16.mxu0 0
    %744 = vmatpush1.bf16.msra.mxu0 %v690
    %745 = vmatprep.subr.bf16.mxu0 0
    %746 = vmatpush1.bf16.msra.mxu0 %v689
    %747 = vmatprep.subr.bf16.mxu0 0
    %748 = vmatpush1.bf16.msra.mxu0 %v688
    %749 = vmatprep.subr.bf16.mxu0 0
    %750 = vmatpush1.bf16.msra.mxu0 %v687
    %751 = vmatprep.subr.bf16.mxu0 0
    %752 = vmatpush1.bf16.msra.mxu0 %v686
    %753 = vmatprep.subr.bf16.mxu0 0
    %754 = vmatpush1.bf16.msra.mxu0 %v685
    %755 = vmatprep.subr.bf16.mxu0 0
    %756 = vmatpush1.bf16.msra.mxu0 %v684
    %757 = vmatprep.subr.bf16.mxu0 0
    %758 = vmatpush1.bf16.msra.mxu0 %v683
    %759 = vmatprep.subr.bf16.mxu0 0
    %760 = vmatpush2.bf16.msra.mxu0 0
    %761 = vmatprep.subr.bf16.mxu0 0
    %762 = vmatpush2.bf16.msra.mxu0 0
    %763 = vmatprep.subr.bf16.mxu0 0
    %764 = vmatpush2.bf16.msra.mxu0 0
    %765 = vmatprep.subr.bf16.mxu0 0
    %766 = vmatpush2.bf16.msra.mxu0 0
    %767 = vmatprep.subr.bf16.mxu0 0
    %768 = vmatpush2.bf16.msra.mxu0 %v694
    %769 = vmatprep.subr.bf16.mxu0 0
    %770 = vmatpush2.bf16.msra.mxu0 %v693
    %771 = vmatprep.subr.bf16.mxu0 0
    %772 = vmatpush2.bf16.msra.mxu0 %v692
    %773 = vmatprep.subr.bf16.mxu0 0
    %774 = vmatpush2.bf16.msra.mxu0 %v691
    %775 = vmatprep.mubr.bf16.mxu0 %v708
    %776 = vmatmul.mubr.bf16.gmra.mxu0 %v558
    %v777 = vpop.f32.mrf.mxu0
    %v778 = vadd.f32 %v633, %v777
    %v779 = vpop.f32.mrf.mxu0
    %v780 = vpop.f32.mrf.mxu0
    %v781 = vadd.f32 %v633, %v780
    %v782 = vpop.f32.mrf.mxu0
    %783 = vmatprep.mubr.bf16.mxu0 %v711
    %784 = vmatmul.mubr.bf16.gmra.mxu0 %v562
    %v785 = vpop.f32.mrf.mxu0
    %v786 = vadd.f32 %v633, %v785
    %v787 = vpop.f32.mrf.mxu0
    %v788 = vpop.f32.mrf.mxu0
    %v789 = vadd.f32 %v633, %v788
    %v790 = vpop.f32.mrf.mxu0
    %791 = vmatprep.mubr.bf16.mxu0 %v714
    %792 = vmatmul.mubr.bf16.gmra.mxu0 %v566
    %v793 = vpop.f32.mrf.mxu0
    %v794 = vadd.f32 %v633, %v793
    %v795 = vpop.f32.mrf.mxu0
    %v796 = vpop.f32.mrf.mxu0
    %v797 = vadd.f32 %v633, %v796
    %v798 = vpop.f32.mrf.mxu0
    %799 = vmatprep.mubr.bf16.mxu0 %v717
    %800 = vmatmul.mubr.bf16.gmra.mxu0 %v570
    %v801 = vpop.f32.mrf.mxu0
    %v802 = vadd.f32 %v633, %v801
    %v803 = vpop.f32.mrf.mxu0
    %v804 = vpop.f32.mrf.mxu0
    %v805 = vadd.f32 %v633, %v804
    %v806 = vpop.f32.mrf.mxu0
    %807 = vmatprep.mubr.bf16.mxu0 %v720
    %808 = vmatmul.mubr.bf16.gmra.mxu0 %v574
    %v809 = vpop.f32.mrf.mxu0
    %v810 = vadd.f32 %v633, %v809
    %v811 = vpop.f32.mrf.mxu0
    %v812 = vpop.f32.mrf.mxu0
    %v813 = vadd.f32 %v633, %v812
    %v814 = vpop.f32.mrf.mxu0
    %815 = vmatprep.mubr.bf16.mxu0 %v723
    %816 = vmatmul.mubr.bf16.gmra.mxu0 %v578
    %v817 = vpop.f32.mrf.mxu0
    %v818 = vadd.f32 %v633, %v817
    %v819 = vpop.f32.mrf.mxu0
    %v820 = vpop.f32.mrf.mxu0
    %v821 = vadd.f32 %v633, %v820
    %v822 = vpop.f32.mrf.mxu0
    %823 = vmatprep.mubr.bf16.mxu0 %v726
    %824 = vmatmul.mubr.bf16.gmra.mxu0 %v582
    %v825 = vpop.f32.mrf.mxu0
    %v826 = vadd.f32 %v633, %v825
    %v827 = vpop.f32.mrf.mxu0
    %v828 = vpop.f32.mrf.mxu0
    %v829 = vadd.f32 %v633, %v828
    %v830 = vpop.f32.mrf.mxu0
    %831 = vmatprep.mubr.bf16.mxu0 %v729
    %832 = vmatmul.mubr.bf16.gmra.mxu0 %v586
    %v833 = vpop.f32.mrf.mxu0
    %v834 = vadd.f32 %v633, %v833
    %v835 = vpop.f32.mrf.mxu0
    %v836 = vpop.f32.mrf.mxu0
    %v837 = vadd.f32 %v633, %v836
    %v838 = vpop.f32.mrf.mxu0
    %839 = vmatprep.mubr.bf16.mxu0 %v732
    %840 = vmatmul.mubr.bf16.gmra.mxu0 %v590
    %v841 = vpop.f32.mrf.mxu0
    %v842 = vadd.f32 %v633, %v841
    %v843 = vpop.f32.mrf.mxu0
    %v844 = vpop.f32.mrf.mxu0
    %v845 = vadd.f32 %v633, %v844
    %v846 = vpop.f32.mrf.mxu0
    %847 = vmatprep.mubr.bf16.mxu0 %v735
    %848 = vmatmul.mubr.bf16.gmra.mxu0 %v594
    %v849 = vpop.f32.mrf.mxu0
    %v850 = vadd.f32 %v633, %v849
    %v851 = vpop.f32.mrf.mxu0
    %v852 = vpop.f32.mrf.mxu0
    %v853 = vadd.f32 %v633, %v852
    %v854 = vpop.f32.mrf.mxu0
    %855 = vmatprep.mubr.bf16.mxu0 %v738
    %856 = vmatmul.mubr.bf16.gmra.mxu0 %v598
    %v857 = vpop.f32.mrf.mxu0
    %v858 = vadd.f32 %v633, %v857
    %v859 = vpop.f32.mrf.mxu0
    %v860 = vpop.f32.mrf.mxu0
    %v861 = vadd.f32 %v633, %v860
    %v862 = vpop.f32.mrf.mxu0
    %863 = vmatprep.mubr.bf16.mxu0 %v741
    %864 = vmatmul.mubr.bf16.gmra.mxu0 %v602
    %v865 = vpop.f32.mrf.mxu0
    %v866 = vadd.f32 %v633, %v865
    %v867 = vpop.f32.mrf.mxu0
    %v868 = vpop.f32.mrf.mxu0
    %v869 = vadd.f32 %v633, %v868
    %v870 = vpop.f32.mrf.mxu0
    %871 = vdwg.mxu0
    %v872 = vmax.f32 %v778, 0.0
    %v873 = vmax.f32 %v781, 0.0
    %v874 = vmax.f32 %v786, 0.0
    %v875 = vmax.f32 %v789, 0.0
    %v876 = vmax.f32 %v794, 0.0
    %v877 = vmax.f32 %v797, 0.0
    %v878 = vmax.f32 %v802, 0.0
    %v879 = vmax.f32 %v805, 0.0
    %v880 = vmax.f32 %v810, 0.0
    %v881 = vmax.f32 %v813, 0.0
    %v882 = vmax.f32 %v818, 0.0
    %v883 = vmax.f32 %v821, 0.0
    %v884 = vmax.f32 %v826, 0.0
    %v885 = vmax.f32 %v829, 0.0
    %v886 = vmax.f32 %v834, 0.0
    %v887 = vmax.f32 %v837, 0.0
    %v888 = vmax.f32 %v842, 0.0
    %v889 = vmax.f32 %v845, 0.0
    %v890 = vmax.f32 %v850, 0.0
    %v891 = vmax.f32 %v853, 0.0
    %v892 = vmax.f32 %v858, 0.0
    %v893 = vmax.f32 %v861, 0.0
    %v894 = vmax.f32 %v866, 0.0
    %v895 = vmax.f32 %v869, 0.0
    %v896 = vsel %vm361, 1, 0
    %v897 = vsel %vm362, 1, 0
    %v898 = vsel %vm363, 1, 0
    %v899 = vsel %vm364, 1, 0
    %v900 = vsel %vm365, 1, 0
    %v901 = vsel %vm366, 1, 0
    %v902 = vsel %vm367, 1, 0
    %v903 = vsel %vm368, 1, 0
    %v904 = vsel %vm369, 1, 0
    %v905 = vsel %vm370, 1, 0
    %v906 = vsel %vm371, 1, 0
    %v907 = vsel %vm372, 1, 0
    %v908 = vsel %vm373, 1, 0
    %v909 = vsel %vm374, 1, 0
    %v910 = vsel %vm375, 1, 0
    %v911 = vsel %vm376, 1, 0
    %v912 = vsel %vm377, 1, 0
    %v913 = vsel %vm378, 1, 0
    %v914 = vsel %vm379, 1, 0
    %v915 = vsel %vm380, 1, 0
    %v916 = vsel %vm381, 1, 0
    %v917 = vsel %vm382, 1, 0
    %v918 = vsel %vm383, 1, 0
    %v919 = vsel %vm384, 1, 0
    %vm920 = vcmp.eq.s32.totalorder %v896, 1
    %vm921 = vcmp.eq.s32.totalorder %v897, 1
    %vm922 = vcmp.eq.s32.totalorder %v898, 1
    %vm923 = vcmp.eq.s32.totalorder %v899, 1
    %vm924 = vcmp.eq.s32.totalorder %v900, 1
    %vm925 = vcmp.eq.s32.totalorder %v901, 1
    %vm926 = vcmp.eq.s32.totalorder %v902, 1
    %vm927 = vcmp.eq.s32.totalorder %v903, 1
    %vm928 = vcmp.eq.s32.totalorder %v904, 1
    %vm929 = vcmp.eq.s32.totalorder %v905, 1
    %vm930 = vcmp.eq.s32.totalorder %v906, 1
    %vm931 = vcmp.eq.s32.totalorder %v907, 1
    %vm932 = vcmp.eq.s32.totalorder %v908, 1
    %vm933 = vcmp.eq.s32.totalorder %v909, 1
    %vm934 = vcmp.eq.s32.totalorder %v910, 1
    %vm935 = vcmp.eq.s32.totalorder %v911, 1
    %vm936 = vcmp.eq.s32.totalorder %v912, 1
    %vm937 = vcmp.eq.s32.totalorder %v913, 1
    %vm938 = vcmp.eq.s32.totalorder %v914, 1
    %vm939 = vcmp.eq.s32.totalorder %v915, 1
    %vm940 = vcmp.eq.s32.totalorder %v916, 1
    %vm941 = vcmp.eq.s32.totalorder %v917, 1
    %vm942 = vcmp.eq.s32.totalorder %v918, 1
    %vm943 = vcmp.eq.s32.totalorder %v919, 1
    %v944 = vsel %vm920, %v872, 0.0
    %v945 = vsel %vm921, %v873, 0.0
    %v946 = vsel %vm922, %v874, 0.0
    %v947 = vsel %vm923, %v875, 0.0
    %v948 = vsel %vm924, %v876, 0.0
    %v949 = vsel %vm925, %v877, 0.0
    %v950 = vsel %vm926, %v878, 0.0
    %v951 = vsel %vm927, %v879, 0.0
    %v952 = vsel %vm928, %v880, 0.0
    %v953 = vsel %vm929, %v881, 0.0
    %v954 = vsel %vm930, %v882, 0.0
    %v955 = vsel %vm931, %v883, 0.0
    %v956 = vsel %vm932, %v884, 0.0
    %v957 = vsel %vm933, %v885, 0.0
    %v958 = vsel %vm934, %v886, 0.0
    %v959 = vsel %vm935, %v887, 0.0
    %v960 = vsel %vm936, %v888, 0.0
    %v961 = vsel %vm937, %v889, 0.0
    %v962 = vsel %vm938, %v890, 0.0
    %v963 = vsel %vm939, %v891, 0.0
    %v964 = vsel %vm940, %v892, 0.0
    %v965 = vsel %vm941, %v893, 0.0
    %v966 = vsel %vm942, %v894, 0.0
    %v967 = vsel %vm943, %v895, 0.0
    %v968 = vrot.slane %v944, 7
    %v969 = vrot.slane %v945, 7
    %v970 = vrot.slane %v946, 7
    %v971 = vrot.slane %v947, 7
    %v972 = vrot.slane %v948, 7
    %v973 = vrot.slane %v949, 7
    %v974 = vrot.slane %v950, 7
    %v975 = vrot.slane %v951, 7
    %v976 = vrot.slane %v952, 7
    %v977 = vrot.slane %v953, 7
    %v978 = vrot.slane %v954, 7
    %v979 = vrot.slane %v955, 7
    %v980 = vrot.slane %v956, 7
    %v981 = vrot.slane %v957, 7
    %v982 = vrot.slane %v958, 7
    %v983 = vrot.slane %v959, 7
    %v984 = vrot.slane %v960, 7
    %v985 = vrot.slane %v961, 7
    %v986 = vrot.slane %v962, 7
    %v987 = vrot.slane %v963, 7
    %v988 = vrot.slane %v964, 7
    %v989 = vrot.slane %v965, 7
    %v990 = vrot.slane %v966, 7
    %v991 = vrot.slane %v967, 7
    %v992 = vsel %vm409, %v990, %v991
    %v993 = vsel %vm409, %v989, %v990
    %v994 = vsel %vm409, %v988, %v989
    %v995 = vsel %vm409, %v987, %v988
    %v996 = vsel %vm409, %v986, %v987
    %v997 = vsel %vm409, %v985, %v986
    %v998 = vsel %vm409, %v984, %v985
    %v999 = vsel %vm409, %v983, %v984
    %v1000 = vsel %vm409, %v982, %v983
    %v1001 = vsel %vm409, %v981, %v982
    %v1002 = vsel %vm409, %v980, %v981
    %v1003 = vsel %vm409, %v979, %v980
    %v1004 = vsel %vm409, %v978, %v979
    %v1005 = vsel %vm409, %v977, %v978
    %v1006 = vsel %vm409, %v976, %v977
    %v1007 = vsel %vm409, %v975, %v976
    %v1008 = vsel %vm409, %v974, %v975
    %v1009 = vsel %vm409, %v973, %v974
    %v1010 = vsel %vm409, %v972, %v973
    %v1011 = vsel %vm409, %v971, %v972
    %v1012 = vsel %vm409, %v970, %v971
    %v1013 = vsel %vm409, %v969, %v970
    %v1014 = vsel %vm409, %v968, %v969
    %v1015 = vsel %vm409, %v991, %v968
    %v1016 = vrot.slane %v944, 1
    %v1017 = vrot.slane %v945, 1
    %v1018 = vrot.slane %v946, 1
    %v1019 = vrot.slane %v947, 1
    %v1020 = vrot.slane %v948, 1
    %v1021 = vrot.slane %v949, 1
    %v1022 = vrot.slane %v950, 1
    %v1023 = vrot.slane %v951, 1
    %v1024 = vrot.slane %v952, 1
    %v1025 = vrot.slane %v953, 1
    %v1026 = vrot.slane %v954, 1
    %v1027 = vrot.slane %v955, 1
    %v1028 = vrot.slane %v956, 1
    %v1029 = vrot.slane %v957, 1
    %v1030 = vrot.slane %v958, 1
    %v1031 = vrot.slane %v959, 1
    %v1032 = vrot.slane %v960, 1
    %v1033 = vrot.slane %v961, 1
    %v1034 = vrot.slane %v962, 1
    %v1035 = vrot.slane %v963, 1
    %v1036 = vrot.slane %v964, 1
    %v1037 = vrot.slane %v965, 1
    %v1038 = vrot.slane %v966, 1
    %v1039 = vrot.slane %v967, 1
    %v1040 = vsel %vm458, %v1038, %v1039
    %v1041 = vsel %vm458, %v1037, %v1038
    %v1042 = vsel %vm458, %v1036, %v1037
    %v1043 = vsel %vm458, %v1035, %v1036
    %v1044 = vsel %vm458, %v1034, %v1035
    %v1045 = vsel %vm458, %v1033, %v1034
    %v1046 = vsel %vm458, %v1032, %v1033
    %v1047 = vsel %vm458, %v1031, %v1032
    %v1048 = vsel %vm458, %v1030, %v1031
    %v1049 = vsel %vm458, %v1029, %v1030
    %v1050 = vsel %vm458, %v1028, %v1029
    %v1051 = vsel %vm458, %v1027, %v1028
    %v1052 = vsel %vm458, %v1026, %v1027
    %v1053 = vsel %vm458, %v1025, %v1026
    %v1054 = vsel %vm458, %v1024, %v1025
    %v1055 = vsel %vm458, %v1023, %v1024
    %v1056 = vsel %vm458, %v1022, %v1023
    %v1057 = vsel %vm458, %v1021, %v1022
    %v1058 = vsel %vm458, %v1020, %v1021
    %v1059 = vsel %vm458, %v1019, %v1020
    %v1060 = vsel %vm458, %v1018, %v1019
    %v1061 = vsel %vm458, %v1017, %v1018
    %v1062 = vsel %vm458, %v1016, %v1017
    %v1063 = vsel %vm458, %v1039, %v1016
    %v1064 = vpack.c.bf16 %v1014, %v1015
    %v1065 = vpack.c.bf16 %v1012, %v1013
    %v1066 = vpack.c.bf16 %v1010, %v1011
    %v1067 = vpack.c.bf16 %v1008, %v1009
    %v1068 = vpack.c.bf16 %v1006, %v1007
    %v1069 = vpack.c.bf16 %v1004, %v1005
    %v1070 = vpack.c.bf16 %v1002, %v1003
    %v1071 = vpack.c.bf16 %v1000, %v1001
    %v1072 = vpack.c.bf16 %v998, %v999
    %v1073 = vpack.c.bf16 %v996, %v997
    %v1074 = vpack.c.bf16 %v994, %v995
    %v1075 = vpack.c.bf16 %v992, %v993
    %v1076 = vpack.c.bf16 %v945, %v944
    %v1077 = vpack.c.bf16 %v947, %v946
    %v1078 = vpack.c.bf16 %v949, %v948
    %v1079 = vpack.c.bf16 %v951, %v950
    %v1080 = vpack.c.bf16 %v953, %v952
    %v1081 = vpack.c.bf16 %v955, %v954
    %v1082 = vpack.c.bf16 %v957, %v956
    %v1083 = vpack.c.bf16 %v959, %v958
    %v1084 = vpack.c.bf16 %v961, %v960
    %v1085 = vpack.c.bf16 %v963, %v962
    %v1086 = vpack.c.bf16 %v965, %v964
    %v1087 = vpack.c.bf16 %v967, %v966
    %v1088 = vpack.c.bf16 %v1061, %v1062
    %v1089 = vpack.c.bf16 %v1059, %v1060
    %v1090 = vpack.c.bf16 %v1057, %v1058
    %v1091 = vpack.c.bf16 %v1055, %v1056
    %v1092 = vpack.c.bf16 %v1053, %v1054
    %v1093 = vpack.c.bf16 %v1051, %v1052
    %v1094 = vpack.c.bf16 %v1049, %v1050
    %v1095 = vpack.c.bf16 %v1047, %v1048
    %v1096 = vpack.c.bf16 %v1045, %v1046
    %v1097 = vpack.c.bf16 %v1043, %v1044
    %v1098 = vpack.c.bf16 %v1041, %v1042
    %v1099 = vpack.c.bf16 %v1063, %v1040
    %v1100 = vld [vmem:[%s3] sm:$0xf]
    %v1101 = vld [vmem:[%s3 + $0x4] sm:$0xf]
    %v1102 = vld [vmem:[%s3 + $0x8] sm:$0xf]
    %v1103 = vld [vmem:[%s3 + $0xc] sm:$0xf]
    %v1104 = vld [vmem:[%s3 + $0x10] sm:$0xf]
    %v1105 = vld [vmem:[%s3 + $0x14] sm:$0xf]
    %v1106 = vld [vmem:[%s3 + $0x18] sm:$0xf]
    %v1107 = vld [vmem:[%s3 + $0x1c] sm:$0xf]
    %v1108 = vld [vmem:[%s3 + $0x20] sm:$0xf]
    %v1109 = vld [vmem:[%s3 + $0x24] sm:$0xf]
    %v1110 = vld [vmem:[%s3 + $0x28] sm:$0xf]
    %v1111 = vld [vmem:[%s3 + $0x2c] sm:$0xf]
    %v1112 = vld [vmem:[%s3 + $0x30] sm:$0xf]
    %v1113 = vld [vmem:[%s3 + $0x34] sm:$0xf]
    %v1114 = vld [vmem:[%s3 + $0x38] sm:$0xf]
    %v1115 = vld [vmem:[%s3 + $0x3c] sm:$0xf]
    %v1116 = vld [vmem:[%s3 + $0x40] sm:$0xf]
    %v1117 = vld [vmem:[%s3 + $0x44] sm:$0xf]
    %v1118 = vld [vmem:[%s3 + $0x48] sm:$0xf]
    %v1119 = vld [vmem:[%s3 + $0x4c] sm:$0xf]
    %v1120 = vld [vmem:[%s3 + $0x50] sm:$0xf]
    %v1121 = vld [vmem:[%s3 + $0x54] sm:$0xf]
    %v1122 = vld [vmem:[%s3 + $0x58] sm:$0xf]
    %v1123 = vld [vmem:[%s3 + $0x5c] sm:$0xf]
    %v1124 = vld [vmem:[%s3 + $0x60] sm:$0xf]
    %v1125 = vld [vmem:[%s3 + $0x64] sm:$0xf]
    %v1126 = vld [vmem:[%s3 + $0x68] sm:$0xf]
    %v1127 = vld [vmem:[%s3 + $0x6c] sm:$0xf]
    %v1128 = vld [vmem:[%s3 + $0x70] sm:$0xf]
    %v1129 = vld [vmem:[%s3 + $0x74] sm:$0xf]
    %v1130 = vld [vmem:[%s3 + $0x78] sm:$0xf]
    %v1131 = vld [vmem:[%s3 + $0x7c] sm:$0xf]
    %v1132 = vld [vmem:[%s3 + $0x80] sm:$0xf]
    %v1133 = vld [vmem:[%s3 + $0x84] sm:$0xf]
    %v1134 = vld [vmem:[%s3 + $0x88] sm:$0xf]
    %v1135 = vld [vmem:[%s3 + $0x8c] sm:$0xf]
    %v1136 = vld [vmem:[%s3 + $0x90] sm:$0xf]
    %v1137 = vld [vmem:[%s3 + $0x94] sm:$0xf]
    %v1138 = vld [vmem:[%s3 + $0x98] sm:$0xf]
    %v1139 = vld [vmem:[%s3 + $0x9c] sm:$0xf]
    %v1140 = vld [vmem:[%s3 + $0xa0] sm:$0xf]
    %v1141 = vld [vmem:[%s3 + $0xa4] sm:$0xf]
    %v1142 = vld [vmem:[%s3 + $0xa8] sm:$0xf]
    %v1143 = vld [vmem:[%s3 + $0xac] sm:$0xf]
    %v1144 = vld [vmem:[%s3 + $0xb0] sm:$0xf]
    %v1145 = vld [vmem:[%s3 + $0xb4] sm:$0xf]
    %v1146 = vld [vmem:[%s3 + $0xb8] sm:$0xf]
    %v1147 = vld [vmem:[%s3 + $0xbc] sm:$0xf]
    %v1148 = vld [vmem:[%s4] sm:$0x1]
    %v1150 = vlaneseq
    %v1151 = vshrl.u32 %v1150, 7
    %v1152 = vsub.s32 0, %v1151
    %v1153 = vrot.slane %v1148, %v1152
    %v1203 = vunpack.c.l.b16 %v1100
    %v1204 = vunpack.c.l.b16 %v1101
    %v1205 = vunpack.c.l.b16 %v1102
    %v1206 = vunpack.c.l.b16 %v1103
    %v1207 = vunpack.c.l.b16 %v1104
    %v1208 = vunpack.c.l.b16 %v1105
    %v1209 = vunpack.c.l.b16 %v1106
    %v1210 = vunpack.c.l.b16 %v1107
    %v1211 = vunpack.c.l.b16 %v1108
    %v1212 = vunpack.c.l.b16 %v1109
    %v1213 = vunpack.c.l.b16 %v1110
    %v1214 = vunpack.c.l.b16 %v1111
    %v1215 = vunpack.c.l.b16 %v1112
    %v1216 = vunpack.c.l.b16 %v1113
    %v1217 = vunpack.c.l.b16 %v1114
    %v1218 = vunpack.c.l.b16 %v1115
    %v1219 = vunpack.c.l.b16 %v1116
    %v1220 = vunpack.c.l.b16 %v1117
    %v1221 = vunpack.c.l.b16 %v1118
    %v1222 = vunpack.c.l.b16 %v1119
    %v1223 = vunpack.c.l.b16 %v1120
    %v1224 = vunpack.c.l.b16 %v1121
    %v1225 = vunpack.c.l.b16 %v1122
    %v1226 = vunpack.c.l.b16 %v1123
    %v1227 = vunpack.c.l.b16 %v1124
    %v1228 = vunpack.c.l.b16 %v1125
    %v1229 = vunpack.c.l.b16 %v1126
    %v1230 = vunpack.c.l.b16 %v1127
    %v1231 = vunpack.c.l.b16 %v1128
    %v1232 = vunpack.c.l.b16 %v1129
    %v1233 = vunpack.c.l.b16 %v1130
    %v1234 = vunpack.c.l.b16 %v1131
    %v1235 = vunpack.c.l.b16 %v1132
    %v1236 = vunpack.c.l.b16 %v1133
    %v1237 = vunpack.c.l.b16 %v1134
    %v1238 = vunpack.c.l.b16 %v1135
    %v1239 = vunpack.c.l.b16 %v1136
    %v1240 = vunpack.c.l.b16 %v1137
    %v1241 = vunpack.c.l.b16 %v1138
    %v1242 = vunpack.c.l.b16 %v1139
    %v1243 = vunpack.c.l.b16 %v1140
    %v1244 = vunpack.c.l.b16 %v1141
    %v1245 = vunpack.c.l.b16 %v1142
    %v1246 = vunpack.c.l.b16 %v1143
    %v1247 = vunpack.c.l.b16 %v1144
    %v1248 = vunpack.c.l.b16 %v1145
    %v1249 = vunpack.c.l.b16 %v1146
    %v1250 = vunpack.c.l.b16 %v1147
    %v1251 = vpack.c.b16 %v1204, %v1203
    %v1252 = vpack.c.b16 %v1206, %v1205
    %v1253 = vpack.c.b16 %v1208, %v1207
    %v1254 = vpack.c.b16 %v1210, %v1209
    %v1255 = vpack.c.b16 %v1212, %v1211
    %v1256 = vpack.c.b16 %v1214, %v1213
    %v1257 = vpack.c.b16 %v1216, %v1215
    %v1258 = vpack.c.b16 %v1218, %v1217
    %v1259 = vpack.c.b16 %v1220, %v1219
    %v1260 = vpack.c.b16 %v1222, %v1221
    %v1261 = vpack.c.b16 %v1224, %v1223
    %v1262 = vpack.c.b16 %v1226, %v1225
    %v1263 = vpack.c.b16 %v1228, %v1227
    %v1264 = vpack.c.b16 %v1230, %v1229
    %v1265 = vpack.c.b16 %v1232, %v1231
    %v1266 = vpack.c.b16 %v1234, %v1233
    %v1267 = vpack.c.b16 %v1236, %v1235
    %v1268 = vpack.c.b16 %v1238, %v1237
    %v1269 = vpack.c.b16 %v1240, %v1239
    %v1270 = vpack.c.b16 %v1242, %v1241
    %v1271 = vpack.c.b16 %v1244, %v1243
    %v1272 = vpack.c.b16 %v1246, %v1245
    %v1273 = vpack.c.b16 %v1248, %v1247
    %v1274 = vpack.c.b16 %v1250, %v1249
    %1299 = vmatprep.subr.bf16.mxu0 0
    %1300 = vmatpush1.bf16.msra.mxu0 %v1258
    %1301 = vmatprep.subr.bf16.mxu0 0
    %1302 = vmatpush1.bf16.msra.mxu0 %v1257
    %1303 = vmatprep.subr.bf16.mxu0 0
    %1304 = vmatpush1.bf16.msra.mxu0 %v1256
    %1305 = vmatprep.subr.bf16.mxu0 0
    %1306 = vmatpush1.bf16.msra.mxu0 %v1255
    %1307 = vmatprep.subr.bf16.mxu0 0
    %1308 = vmatpush1.bf16.msra.mxu0 %v1254
    %1309 = vmatprep.subr.bf16.mxu0 0
    %1310 = vmatpush1.bf16.msra.mxu0 %v1253
    %1311 = vmatprep.subr.bf16.mxu0 0
    %1312 = vmatpush1.bf16.msra.mxu0 %v1252
    %1313 = vmatprep.subr.bf16.mxu0 0
    %1314 = vmatpush1.bf16.msra.mxu0 %v1251
    %1315 = vmatprep.subr.bf16.mxu0 0
    %1316 = vmatpush2.bf16.msra.mxu0 %v1266
    %1317 = vmatprep.subr.bf16.mxu0 0
    %1318 = vmatpush2.bf16.msra.mxu0 %v1265
    %1319 = vmatprep.subr.bf16.mxu0 0
    %1320 = vmatpush2.bf16.msra.mxu0 %v1264
    %1321 = vmatprep.subr.bf16.mxu0 0
    %1322 = vmatpush2.bf16.msra.mxu0 %v1263
    %1323 = vmatprep.subr.bf16.mxu0 0
    %1324 = vmatpush2.bf16.msra.mxu0 %v1262
    %1325 = vmatprep.subr.bf16.mxu0 0
    %1326 = vmatpush2.bf16.msra.mxu0 %v1261
    %1327 = vmatprep.subr.bf16.mxu0 0
    %1328 = vmatpush2.bf16.msra.mxu0 %v1260
    %1329 = vmatprep.subr.bf16.mxu0 0
    %1330 = vmatpush2.bf16.msra.mxu0 %v1259
    %1331 = vmatprep.mubr.bf16.mxu0 %v1076
    %1332 = vmatmul.mubr.bf16.gmra.mxu0 %v1064
    %v1333 = vpop.f32.mrf.mxu0
    %v1334 = vadd.f32 %v1153, %v1333
    %v1335 = vpop.f32.mrf.mxu0
    %v1336 = vpop.f32.mrf.mxu0
    %v1337 = vadd.f32 %v1153, %v1336
    %v1338 = vpop.f32.mrf.mxu0
    %1339 = vmatprep.mubr.bf16.mxu0 %v1077
    %1340 = vmatmul.mubr.bf16.gmra.mxu0 %v1065
    %v1341 = vpop.f32.mrf.mxu0
    %v1342 = vadd.f32 %v1153, %v1341
    %v1343 = vpop.f32.mrf.mxu0
    %v1344 = vpop.f32.mrf.mxu0
    %v1345 = vadd.f32 %v1153, %v1344
    %v1346 = vpop.f32.mrf.mxu0
    %1347 = vmatprep.mubr.bf16.mxu0 %v1078
    %1348 = vmatmul.mubr.bf16.gmra.mxu0 %v1066
    %v1349 = vpop.f32.mrf.mxu0
    %v1350 = vadd.f32 %v1153, %v1349
    %v1351 = vpop.f32.mrf.mxu0
    %v1352 = vpop.f32.mrf.mxu0
    %v1353 = vadd.f32 %v1153, %v1352
    %v1354 = vpop.f32.mrf.mxu0
    %1355 = vmatprep.mubr.bf16.mxu0 %v1079
    %1356 = vmatmul.mubr.bf16.gmra.mxu0 %v1067
    %v1357 = vpop.f32.mrf.mxu0
    %v1358 = vadd.f32 %v1153, %v1357
    %v1359 = vpop.f32.mrf.mxu0
    %v1360 = vpop.f32.mrf.mxu0
    %v1361 = vadd.f32 %v1153, %v1360
    %v1362 = vpop.f32.mrf.mxu0
    %1363 = vmatprep.mubr.bf16.mxu0 %v1080
    %1364 = vmatmul.mubr.bf16.gmra.mxu0 %v1068
    %v1365 = vpop.f32.mrf.mxu0
    %v1366 = vadd.f32 %v1153, %v1365
    %v1367 = vpop.f32.mrf.mxu0
    %v1368 = vpop.f32.mrf.mxu0
    %v1369 = vadd.f32 %v1153, %v1368
    %v1370 = vpop.f32.mrf.mxu0
    %1371 = vmatprep.mubr.bf16.mxu0 %v1081
    %1372 = vmatmul.mubr.bf16.gmra.mxu0 %v1069
    %v1373 = vpop.f32.mrf.mxu0
    %v1374 = vadd.f32 %v1153, %v1373
    %v1375 = vpop.f32.mrf.mxu0
    %v1376 = vpop.f32.mrf.mxu0
    %v1377 = vadd.f32 %v1153, %v1376
    %v1378 = vpop.f32.mrf.mxu0
    %1379 = vmatprep.mubr.bf16.mxu0 %v1082
    %1380 = vmatmul.mubr.bf16.gmra.mxu0 %v1070
    %v1381 = vpop.f32.mrf.mxu0
    %v1382 = vadd.f32 %v1153, %v1381
    %v1383 = vpop.f32.mrf.mxu0
    %v1384 = vpop.f32.mrf.mxu0
    %v1385 = vadd.f32 %v1153, %v1384
    %v1386 = vpop.f32.mrf.mxu0
    %1387 = vmatprep.mubr.bf16.mxu0 %v1083
    %1388 = vmatmul.mubr.bf16.gmra.mxu0 %v1071
    %v1389 = vpop.f32.mrf.mxu0
    %v1390 = vadd.f32 %v1153, %v1389
    %v1391 = vpop.f32.mrf.mxu0
    %v1392 = vpop.f32.mrf.mxu0
    %v1393 = vadd.f32 %v1153, %v1392
    %v1394 = vpop.f32.mrf.mxu0
    %1395 = vmatprep.mubr.bf16.mxu0 %v1084
    %1396 = vmatmul.mubr.bf16.gmra.mxu0 %v1072
    %v1397 = vpop.f32.mrf.mxu0
    %v1398 = vadd.f32 %v1153, %v1397
    %v1399 = vpop.f32.mrf.mxu0
    %v1400 = vpop.f32.mrf.mxu0
    %v1401 = vadd.f32 %v1153, %v1400
    %v1402 = vpop.f32.mrf.mxu0
    %1403 = vmatprep.mubr.bf16.mxu0 %v1085
    %1404 = vmatmul.mubr.bf16.gmra.mxu0 %v1073
    %v1405 = vpop.f32.mrf.mxu0
    %v1406 = vadd.f32 %v1153, %v1405
    %v1407 = vpop.f32.mrf.mxu0
    %v1408 = vpop.f32.mrf.mxu0
    %v1409 = vadd.f32 %v1153, %v1408
    %v1410 = vpop.f32.mrf.mxu0
    %1411 = vmatprep.mubr.bf16.mxu0 %v1086
    %1412 = vmatmul.mubr.bf16.gmra.mxu0 %v1074
    %v1413 = vpop.f32.mrf.mxu0
    %v1414 = vadd.f32 %v1153, %v1413
    %v1415 = vpop.f32.mrf.mxu0
    %v1416 = vpop.f32.mrf.mxu0
    %v1417 = vadd.f32 %v1153, %v1416
    %v1418 = vpop.f32.mrf.mxu0
    %1419 = vmatprep.mubr.bf16.mxu0 %v1087
    %1420 = vmatmul.mubr.bf16.gmra.mxu0 %v1075
    %v1421 = vpop.f32.mrf.mxu0
    %v1422 = vadd.f32 %v1153, %v1421
    %v1423 = vpop.f32.mrf.mxu0
    %v1424 = vpop.f32.mrf.mxu0
    %v1425 = vadd.f32 %v1153, %v1424
    %v1426 = vpop.f32.mrf.mxu0
    %1427 = vdwg.mxu0
    %1428 = vmatprep.subr.bf16.mxu0 0
    %1429 = vmatpush1.bf16.msra.mxu0 %v1274
    %1430 = vmatprep.subr.bf16.mxu0 0
    %1431 = vmatpush1.bf16.msra.mxu0 %v1273
    %1432 = vmatprep.subr.bf16.mxu0 0
    %1433 = vmatpush1.bf16.msra.mxu0 %v1272
    %1434 = vmatprep.subr.bf16.mxu0 0
    %1435 = vmatpush1.bf16.msra.mxu0 %v1271
    %1436 = vmatprep.subr.bf16.mxu0 0
    %1437 = vmatpush1.bf16.msra.mxu0 %v1270
    %1438 = vmatprep.subr.bf16.mxu0 0
    %1439 = vmatpush1.bf16.msra.mxu0 %v1269
    %1440 = vmatprep.subr.bf16.mxu0 0
    %1441 = vmatpush1.bf16.msra.mxu0 %v1268
    %1442 = vmatprep.subr.bf16.mxu0 0
    %1443 = vmatpush1.bf16.msra.mxu0 %v1267
    %1444 = vmatprep.subr.bf16.mxu0 0
    %1445 = vmatpush2.bf16.msra.mxu0 0
    %1446 = vmatprep.subr.bf16.mxu0 0
    %1447 = vmatpush2.bf16.msra.mxu0 0
    %1448 = vmatprep.subr.bf16.mxu0 0
    %1449 = vmatpush2.bf16.msra.mxu0 0
    %1450 = vmatprep.subr.bf16.mxu0 0
    %1451 = vmatpush2.bf16.msra.mxu0 0
    %1452 = vmatprep.subr.bf16.mxu0 0
    %1453 = vmatpush2.bf16.msra.mxu0 0
    %1454 = vmatprep.subr.bf16.mxu0 0
    %1455 = vmatpush2.bf16.msra.mxu0 0
    %1456 = vmatprep.subr.bf16.mxu0 0
    %1457 = vmatpush2.bf16.msra.mxu0 0
    %1458 = vmatprep.subr.bf16.mxu0 0
    %1459 = vmatpush2.bf16.msra.mxu0 0
    %1460 = vmatprep.mubr.bf16.mxu0 0
    %1461 = vmatmul.mubr.bf16.gmra.mxu0 %v1088
    %v1462 = vpop.f32.mrf.mxu0
    %v1463 = vadd.f32 %v1334, %v1462
    %v1464 = vpop.f32.mrf.mxu0
    %v1465 = vpop.f32.mrf.mxu0
    %v1466 = vadd.f32 %v1337, %v1465
    %v1467 = vpop.f32.mrf.mxu0
    %1468 = vmatprep.mubr.bf16.mxu0 0
    %1469 = vmatmul.mubr.bf16.gmra.mxu0 %v1089
    %v1470 = vpop.f32.mrf.mxu0
    %v1471 = vadd.f32 %v1342, %v1470
    %v1472 = vpop.f32.mrf.mxu0
    %v1473 = vpop.f32.mrf.mxu0
    %v1474 = vadd.f32 %v1345, %v1473
    %v1475 = vpop.f32.mrf.mxu0
    %1476 = vmatprep.mubr.bf16.mxu0 0
    %1477 = vmatmul.mubr.bf16.gmra.mxu0 %v1090
    %v1478 = vpop.f32.mrf.mxu0
    %v1479 = vadd.f32 %v1350, %v1478
    %v1480 = vpop.f32.mrf.mxu0
    %v1481 = vpop.f32.mrf.mxu0
    %v1482 = vadd.f32 %v1353, %v1481
    %v1483 = vpop.f32.mrf.mxu0
    %1484 = vmatprep.mubr.bf16.mxu0 0
    %1485 = vmatmul.mubr.bf16.gmra.mxu0 %v1091
    %v1486 = vpop.f32.mrf.mxu0
    %v1487 = vadd.f32 %v1358, %v1486
    %v1488 = vpop.f32.mrf.mxu0
    %v1489 = vpop.f32.mrf.mxu0
    %v1490 = vadd.f32 %v1361, %v1489
    %v1491 = vpop.f32.mrf.mxu0
    %1492 = vmatprep.mubr.bf16.mxu0 0
    %1493 = vmatmul.mubr.bf16.gmra.mxu0 %v1092
    %v1494 = vpop.f32.mrf.mxu0
    %v1495 = vadd.f32 %v1366, %v1494
    %v1496 = vpop.f32.mrf.mxu0
    %v1497 = vpop.f32.mrf.mxu0
    %v1498 = vadd.f32 %v1369, %v1497
    %v1499 = vpop.f32.mrf.mxu0
    %1500 = vmatprep.mubr.bf16.mxu0 0
    %1501 = vmatmul.mubr.bf16.gmra.mxu0 %v1093
    %v1502 = vpop.f32.mrf.mxu0
    %v1503 = vadd.f32 %v1374, %v1502
    %v1504 = vpop.f32.mrf.mxu0
    %v1505 = vpop.f32.mrf.mxu0
    %v1506 = vadd.f32 %v1377, %v1505
    %v1507 = vpop.f32.mrf.mxu0
    %1508 = vmatprep.mubr.bf16.mxu0 0
    %1509 = vmatmul.mubr.bf16.gmra.mxu0 %v1094
    %v1510 = vpop.f32.mrf.mxu0
    %v1511 = vadd.f32 %v1382, %v1510
    %v1512 = vpop.f32.mrf.mxu0
    %v1513 = vpop.f32.mrf.mxu0
    %v1514 = vadd.f32 %v1385, %v1513
    %v1515 = vpop.f32.mrf.mxu0
    %1516 = vmatprep.mubr.bf16.mxu0 0
    %1517 = vmatmul.mubr.bf16.gmra.mxu0 %v1095
    %v1518 = vpop.f32.mrf.mxu0
    %v1519 = vadd.f32 %v1390, %v1518
    %v1520 = vpop.f32.mrf.mxu0
    %v1521 = vpop.f32.mrf.mxu0
    %v1522 = vadd.f32 %v1393, %v1521
    %v1523 = vpop.f32.mrf.mxu0
    %1524 = vmatprep.mubr.bf16.mxu0 0
    %1525 = vmatmul.mubr.bf16.gmra.mxu0 %v1096
    %v1526 = vpop.f32.mrf.mxu0
    %v1527 = vadd.f32 %v1398, %v1526
    %v1528 = vpop.f32.mrf.mxu0
    %v1529 = vpop.f32.mrf.mxu0
    %v1530 = vadd.f32 %v1401, %v1529
    %v1531 = vpop.f32.mrf.mxu0
    %1532 = vmatprep.mubr.bf16.mxu0 0
    %1533 = vmatmul.mubr.bf16.gmra.mxu0 %v1097
    %v1534 = vpop.f32.mrf.mxu0
    %v1535 = vadd.f32 %v1406, %v1534
    %v1536 = vpop.f32.mrf.mxu0
    %v1537 = vpop.f32.mrf.mxu0
    %v1538 = vadd.f32 %v1409, %v1537
    %v1539 = vpop.f32.mrf.mxu0
    %1540 = vmatprep.mubr.bf16.mxu0 0
    %1541 = vmatmul.mubr.bf16.gmra.mxu0 %v1098
    %v1542 = vpop.f32.mrf.mxu0
    %v1543 = vadd.f32 %v1414, %v1542
    %v1544 = vpop.f32.mrf.mxu0
    %v1545 = vpop.f32.mrf.mxu0
    %v1546 = vadd.f32 %v1417, %v1545
    %v1547 = vpop.f32.mrf.mxu0
    %1548 = vmatprep.mubr.bf16.mxu0 0
    %1549 = vmatmul.mubr.bf16.gmra.mxu0 %v1099
    %v1550 = vpop.f32.mrf.mxu0
    %v1551 = vadd.f32 %v1422, %v1550
    %v1552 = vpop.f32.mrf.mxu0
    %v1553 = vpop.f32.mrf.mxu0
    %v1554 = vadd.f32 %v1425, %v1553
    %v1555 = vpop.f32.mrf.mxu0
    %1556 = vdwg.mxu0
    %v1557 = vmax.f32 %v1463, 0.0
    %v1558 = vmax.f32 %v1466, 0.0
    %v1559 = vmax.f32 %v1471, 0.0
    %v1560 = vmax.f32 %v1474, 0.0
    %v1561 = vmax.f32 %v1479, 0.0
    %v1562 = vmax.f32 %v1482, 0.0
    %v1563 = vmax.f32 %v1487, 0.0
    %v1564 = vmax.f32 %v1490, 0.0
    %v1565 = vmax.f32 %v1495, 0.0
    %v1566 = vmax.f32 %v1498, 0.0
    %v1567 = vmax.f32 %v1503, 0.0
    %v1568 = vmax.f32 %v1506, 0.0
    %v1569 = vmax.f32 %v1511, 0.0
    %v1570 = vmax.f32 %v1514, 0.0
    %v1571 = vmax.f32 %v1519, 0.0
    %v1572 = vmax.f32 %v1522, 0.0
    %v1573 = vmax.f32 %v1527, 0.0
    %v1574 = vmax.f32 %v1530, 0.0
    %v1575 = vmax.f32 %v1535, 0.0
    %v1576 = vmax.f32 %v1538, 0.0
    %v1577 = vmax.f32 %v1543, 0.0
    %v1578 = vmax.f32 %v1546, 0.0
    %v1579 = vmax.f32 %v1551, 0.0
    %v1580 = vmax.f32 %v1554, 0.0
    %1581 = vst.msk [vmem:[#allocation2] sm:$0xff] %vm555, %v1557
    %1582 = vst.msk [vmem:[#allocation2 + $0x8] sm:$0xff] %vm555, %v1558
    %1583 = vst.msk [vmem:[#allocation2 + $0x10] sm:$0xff] %vm555, %v1559
    %1584 = vst.msk [vmem:[#allocation2 + $0x18] sm:$0xff] %vm555, %v1560
    %1585 = vst.msk [vmem:[#allocation2 + $0x20] sm:$0xff] %vm555, %v1561
    %1586 = vst.msk [vmem:[#allocation2 + $0x28] sm:$0xff] %vm555, %v1562
    %1587 = vst.msk [vmem:[#allocation2 + $0x30] sm:$0xff] %vm555, %v1563
    %1588 = vst.msk [vmem:[#allocation2 + $0x38] sm:$0xff] %vm555, %v1564
    %1589 = vst.msk [vmem:[#allocation2 + $0x40] sm:$0xff] %vm555, %v1565
    %1590 = vst.msk [vmem:[#allocation2 + $0x48] sm:$0xff] %vm555, %v1566
    %1591 = vst.msk [vmem:[#allocation2 + $0x50] sm:$0xff] %vm555, %v1567
    %1592 = vst.msk [vmem:[#allocation2 + $0x58] sm:$0xff] %vm555, %v1568
    %1593 = vst.msk [vmem:[#allocation2 + $0x60] sm:$0xff] %vm555, %v1569
    %1594 = vst.msk [vmem:[#allocation2 + $0x68] sm:$0xff] %vm555, %v1570
    %1595 = vst.msk [vmem:[#allocation2 + $0x70] sm:$0xff] %vm555, %v1571
    %1596 = vst.msk [vmem:[#allocation2 + $0x78] sm:$0xff] %vm555, %v1572
    %1597 = vst.msk [vmem:[#allocation2 + $0x80] sm:$0xff] %vm555, %v1573
    %1598 = vst.msk [vmem:[#allocation2 + $0x88] sm:$0xff] %vm555, %v1574
    %1599 = vst.msk [vmem:[#allocation2 + $0x90] sm:$0xff] %vm555, %v1575
    %1600 = vst.msk [vmem:[#allocation2 + $0x98] sm:$0xff] %vm555, %v1576
    %1601 = vst.msk [vmem:[#allocation2 + $0xa0] sm:$0xff] %vm555, %v1577
    %1602 = vst.msk [vmem:[#allocation2 + $0xa8] sm:$0xff] %vm555, %v1578
    %1603 = vst.msk [vmem:[#allocation2 + $0xb0] sm:$0xff] %vm555, %v1579
    %1604 = vst.msk [vmem:[#allocation2 + $0xb8] sm:$0xff] %vm555, %v1580
    %v1605 = vld [vmem:[#allocation2] sm:$0x1]
    %v1606 = vld [vmem:[#allocation2 + $0x18] sm:$0x1]
    %v1607 = vld [vmem:[#allocation2 + $0x30] sm:$0x1]
    %v1608 = vld [vmem:[#allocation2 + $0x48] sm:$0x1]
    %v1609 = vld [vmem:[#allocation2 + $0x60] sm:$0x1]
    %v1610 = vld [vmem:[#allocation2 + $0x78] sm:$0x1]
    %v1611 = vld [vmem:[#allocation2 + $0x90] sm:$0x1]
    %v1612 = vld [vmem:[#allocation2 + $0xa8] sm:$0x1]
    %v1613 = vld [vmem:[#allocation2 + $0x1] sm:$0x1]
    %v1614 = vld [vmem:[#allocation2 + $0x19] sm:$0x1]
    %v1615 = vld [vmem:[#allocation2 + $0x31] sm:$0x1]
    %v1616 = vld [vmem:[#allocation2 + $0x49] sm:$0x1]
    %v1617 = vld [vmem:[#allocation2 + $0x61] sm:$0x1]
    %v1618 = vld [vmem:[#allocation2 + $0x79] sm:$0x1]
    %v1619 = vld [vmem:[#allocation2 + $0x91] sm:$0x1]
    %v1620 = vld [vmem:[#allocation2 + $0xa9] sm:$0x1]
    %v1621 = vld [vmem:[#allocation2 + $0x2] sm:$0x1]
    %v1622 = vld [vmem:[#allocation2 + $0x1a] sm:$0x1]
    %v1623 = vld [vmem:[#allocation2 + $0x32] sm:$0x1]
    %v1624 = vld [vmem:[#allocation2 + $0x4a] sm:$0x1]
    %v1625 = vld [vmem:[#allocation2 + $0x62] sm:$0x1]
    %v1626 = vld [vmem:[#allocation2 + $0x7a] sm:$0x1]
    %v1627 = vld [vmem:[#allocation2 + $0x92] sm:$0x1]
    %v1628 = vld [vmem:[#allocation2 + $0xaa] sm:$0x1]
    %v1629 = vld [vmem:[#allocation2 + $0x3] sm:$0x1]
    %v1630 = vld [vmem:[#allocation2 + $0x1b] sm:$0x1]
    %v1631 = vld [vmem:[#allocation2 + $0x33] sm:$0x1]
    %v1632 = vld [vmem:[#allocation2 + $0x4b] sm:$0x1]
    %v1633 = vld [vmem:[#allocation2 + $0x63] sm:$0x1]
    %v1634 = vld [vmem:[#allocation2 + $0x7b] sm:$0x1]
    %v1635 = vld [vmem:[#allocation2 + $0x93] sm:$0x1]
    %v1636 = vld [vmem:[#allocation2 + $0xab] sm:$0x1]
    %v1637 = vld [vmem:[#allocation2 + $0x4] sm:$0x1]
    %v1638 = vld [vmem:[#allocation2 + $0x1c] sm:$0x1]
    %v1639 = vld [vmem:[#allocation2 + $0x34] sm:$0x1]
    %v1640 = vld [vmem:[#allocation2 + $0x4c] sm:$0x1]
    %v1641 = vld [vmem:[#allocation2 + $0x64] sm:$0x1]
    %v1642 = vld [vmem:[#allocation2 + $0x7c] sm:$0x1]
    %v1643 = vld [vmem:[#allocation2 + $0x94] sm:$0x1]
    %v1644 = vld [vmem:[#allocation2 + $0xac] sm:$0x1]
    %v1645 = vld [vmem:[#allocation2 + $0x5] sm:$0x1]
    %v1646 = vld [vmem:[#allocation2 + $0x1d] sm:$0x1]
    %v1647 = vld [vmem:[#allocation2 + $0x35] sm:$0x1]
    %v1648 = vld [vmem:[#allocation2 + $0x4d] sm:$0x1]
    %v1649 = vld [vmem:[#allocation2 + $0x65] sm:$0x1]
    %v1650 = vld [vmem:[#allocation2 + $0x7d] sm:$0x1]
    %v1651 = vld [vmem:[#allocation2 + $0x95] sm:$0x1]
    %v1652 = vld [vmem:[#allocation2 + $0xad] sm:$0x1]
    %v1653 = vld [vmem:[#allocation2 + $0x6] sm:$0x1]
    %v1654 = vld [vmem:[#allocation2 + $0x1e] sm:$0x1]
    %v1655 = vld [vmem:[#allocation2 + $0x36] sm:$0x1]
    %v1656 = vld [vmem:[#allocation2 + $0x4e] sm:$0x1]
    %v1657 = vld [vmem:[#allocation2 + $0x66] sm:$0x1]
    %v1658 = vld [vmem:[#allocation2 + $0x7e] sm:$0x1]
    %v1659 = vld [vmem:[#allocation2 + $0x96] sm:$0x1]
    %v1660 = vld [vmem:[#allocation2 + $0xae] sm:$0x1]
    %v1661 = vld [vmem:[#allocation2 + $0x7] sm:$0x1]
    %v1662 = vld [vmem:[#allocation2 + $0x1f] sm:$0x1]
    %v1663 = vld [vmem:[#allocation2 + $0x37] sm:$0x1]
    %v1664 = vld [vmem:[#allocation2 + $0x4f] sm:$0x1]
    %v1665 = vld [vmem:[#allocation2 + $0x67] sm:$0x1]
    %v1666 = vld [vmem:[#allocation2 + $0x7f] sm:$0x1]
    %v1667 = vld [vmem:[#allocation2 + $0x97] sm:$0x1]
    %v1668 = vld [vmem:[#allocation2 + $0xaf] sm:$0x1]
    %v1669 = vld [vmem:[#allocation2 + $0x8] sm:$0x1]
    %v1670 = vld [vmem:[#allocation2 + $0x20] sm:$0x1]
    %v1671 = vld [vmem:[#allocation2 + $0x38] sm:$0x1]
    %v1672 = vld [vmem:[#allocation2 + $0x50] sm:$0x1]
    %v1673 = vld [vmem:[#allocation2 + $0x68] sm:$0x1]
    %v1674 = vld [vmem:[#allocation2 + $0x80] sm:$0x1]
    %v1675 = vld [vmem:[#allocation2 + $0x98] sm:$0x1]
    %v1676 = vld [vmem:[#allocation2 + $0xb0] sm:$0x1]
    %v1677 = vld [vmem:[#allocation2 + $0x9] sm:$0x1]
    %v1678 = vld [vmem:[#allocation2 + $0x21] sm:$0x1]
    %v1679 = vld [vmem:[#allocation2 + $0x39] sm:$0x1]
    %v1680 = vld [vmem:[#allocation2 + $0x51] sm:$0x1]
    %v1681 = vld [vmem:[#allocation2 + $0x69] sm:$0x1]
    %v1682 = vld [vmem:[#allocation2 + $0x81] sm:$0x1]
    %v1683 = vld [vmem:[#allocation2 + $0x99] sm:$0x1]
    %v1684 = vld [vmem:[#allocation2 + $0xb1] sm:$0x1]
    %v1685 = vld [vmem:[#allocation2 + $0xa] sm:$0x1]
    %v1686 = vld [vmem:[#allocation2 + $0x22] sm:$0x1]
    %v1687 = vld [vmem:[#allocation2 + $0x3a] sm:$0x1]
    %v1688 = vld [vmem:[#allocation2 + $0x52] sm:$0x1]
    %v1689 = vld [vmem:[#allocation2 + $0x6a] sm:$0x1]
    %v1690 = vld [vmem:[#allocation2 + $0x82] sm:$0x1]
    %v1691 = vld [vmem:[#allocation2 + $0x9a] sm:$0x1]
    %v1692 = vld [vmem:[#allocation2 + $0xb2] sm:$0x1]
    %v1693 = vld [vmem:[#allocation2 + $0xb] sm:$0x1]
    %v1694 = vld [vmem:[#allocation2 + $0x23] sm:$0x1]
    %v1695 = vld [vmem:[#allocation2 + $0x3b] sm:$0x1]
    %v1696 = vld [vmem:[#allocation2 + $0x53] sm:$0x1]
    %v1697 = vld [vmem:[#allocation2 + $0x6b] sm:$0x1]
    %v1698 = vld [vmem:[#allocation2 + $0x83] sm:$0x1]
    %v1699 = vld [vmem:[#allocation2 + $0x9b] sm:$0x1]
    %v1700 = vld [vmem:[#allocation2 + $0xb3] sm:$0x1]
    %v1701 = vld [vmem:[#allocation2 + $0xc] sm:$0x1]
    %v1702 = vld [vmem:[#allocation2 + $0x24] sm:$0x1]
    %v1703 = vld [vmem:[#allocation2 + $0x3c] sm:$0x1]
    %v1704 = vld [vmem:[#allocation2 + $0x54] sm:$0x1]
    %v1705 = vld [vmem:[#allocation2 + $0x6c] sm:$0x1]
    %v1706 = vld [vmem:[#allocation2 + $0x84] sm:$0x1]
    %v1707 = vld [vmem:[#allocation2 + $0x9c] sm:$0x1]
    %v1708 = vld [vmem:[#allocation2 + $0xb4] sm:$0x1]
    %v1709 = vld [vmem:[#allocation2 + $0xd] sm:$0x1]
    %v1710 = vld [vmem:[#allocation2 + $0x25] sm:$0x1]
    %v1711 = vld [vmem:[#allocation2 + $0x3d] sm:$0x1]
    %v1712 = vld [vmem:[#allocation2 + $0x55] sm:$0x1]
    %v1713 = vld [vmem:[#allocation2 + $0x6d] sm:$0x1]
    %v1714 = vld [vmem:[#allocation2 + $0x85] sm:$0x1]
    %v1715 = vld [vmem:[#allocation2 + $0x9d] sm:$0x1]
    %v1716 = vld [vmem:[#allocation2 + $0xb5] sm:$0x1]
    %v1717 = vld [vmem:[#allocation2 + $0xe] sm:$0x1]
    %v1718 = vld [vmem:[#allocation2 + $0x26] sm:$0x1]
    %v1719 = vld [vmem:[#allocation2 + $0x3e] sm:$0x1]
    %v1720 = vld [vmem:[#allocation2 + $0x56] sm:$0x1]
    %v1721 = vld [vmem:[#allocation2 + $0x6e] sm:$0x1]
    %v1722 = vld [vmem:[#allocation2 + $0x86] sm:$0x1]
    %v1723 = vld [vmem:[#allocation2 + $0x9e] sm:$0x1]
    %v1724 = vld [vmem:[#allocation2 + $0xb6] sm:$0x1]
    %v1725 = vld [vmem:[#allocation2 + $0xf] sm:$0x1]
    %v1726 = vld [vmem:[#allocation2 + $0x27] sm:$0x1]
    %v1727 = vld [vmem:[#allocation2 + $0x3f] sm:$0x1]
    %v1728 = vld [vmem:[#allocation2 + $0x57] sm:$0x1]
    %v1729 = vld [vmem:[#allocation2 + $0x6f] sm:$0x1]
    %v1730 = vld [vmem:[#allocation2 + $0x87] sm:$0x1]
    %v1731 = vld [vmem:[#allocation2 + $0x9f] sm:$0x1]
    %v1732 = vld [vmem:[#allocation2 + $0xb7] sm:$0x1]
    %v1733 = vld [vmem:[#allocation2 + $0x10] sm:$0x1]
    %v1734 = vld [vmem:[#allocation2 + $0x28] sm:$0x1]
    %v1735 = vld [vmem:[#allocation2 + $0x40] sm:$0x1]
    %v1736 = vld [vmem:[#allocation2 + $0x58] sm:$0x1]
    %v1737 = vld [vmem:[#allocation2 + $0x70] sm:$0x1]
    %v1738 = vld [vmem:[#allocation2 + $0x88] sm:$0x1]
    %v1739 = vld [vmem:[#allocation2 + $0xa0] sm:$0x1]
    %v1740 = vld [vmem:[#allocation2 + $0xb8] sm:$0x1]
    %v1741 = vld [vmem:[#allocation2 + $0x11] sm:$0x1]
    %v1742 = vld [vmem:[#allocation2 + $0x29] sm:$0x1]
    %v1743 = vld [vmem:[#allocation2 + $0x41] sm:$0x1]
    %v1744 = vld [vmem:[#allocation2 + $0x59] sm:$0x1]
    %v1745 = vld [vmem:[#allocation2 + $0x71] sm:$0x1]
    %v1746 = vld [vmem:[#allocation2 + $0x89] sm:$0x1]
    %v1747 = vld [vmem:[#allocation2 + $0xa1] sm:$0x1]
    %v1748 = vld [vmem:[#allocation2 + $0xb9] sm:$0x1]
    %v1749 = vld [vmem:[#allocation2 + $0x12] sm:$0x1]
    %v1750 = vld [vmem:[#allocation2 + $0x2a] sm:$0x1]
    %v1751 = vld [vmem:[#allocation2 + $0x42] sm:$0x1]
    %v1752 = vld [vmem:[#allocation2 + $0x5a] sm:$0x1]
    %v1753 = vld [vmem:[#allocation2 + $0x72] sm:$0x1]
    %v1754 = vld [vmem:[#allocation2 + $0x8a] sm:$0x1]
    %v1755 = vld [vmem:[#allocation2 + $0xa2] sm:$0x1]
    %v1756 = vld [vmem:[#allocation2 + $0xba] sm:$0x1]
    %v1757 = vld [vmem:[#allocation2 + $0x13] sm:$0x1]
    %v1758 = vld [vmem:[#allocation2 + $0x2b] sm:$0x1]
    %v1759 = vld [vmem:[#allocation2 + $0x43] sm:$0x1]
    %v1760 = vld [vmem:[#allocation2 + $0x5b] sm:$0x1]
    %v1761 = vld [vmem:[#allocation2 + $0x73] sm:$0x1]
    %v1762 = vld [vmem:[#allocation2 + $0x8b] sm:$0x1]
    %v1763 = vld [vmem:[#allocation2 + $0xa3] sm:$0x1]
    %v1764 = vld [vmem:[#allocation2 + $0xbb] sm:$0x1]
    %v1773 = vrot.slane %v1606, 7
    %vm1774 = vcmask 1041409
    %v1775 = vsel %vm1774, %v1773, %v1605
    %v1776 = vrot.slane %v1607, 6
    %vm1777 = vcmask 1042434
    %v1778 = vsel %vm1777, %v1776, %v1775
    %v1779 = vrot.slane %v1608, 5
    %vm1780 = vcmask 1043459
    %v1781 = vsel %vm1780, %v1779, %v1778
    %v1782 = vrot.slane %v1609, 4
    %vm1783 = vcmask 1044484
    %v1784 = vsel %vm1783, %v1782, %v1781
    %v1785 = vrot.slane %v1610, 3
    %vm1786 = vcmask 1045509
    %v1787 = vsel %vm1786, %v1785, %v1784
    %v1788 = vrot.slane %v1611, 2
    %vm1789 = vcmask 1046534
    %v1790 = vsel %vm1789, %v1788, %v1787
    %v1791 = vrot.slane %v1612, 1
    %vm1792 = vcmask 1047559
    %v1793 = vsel %vm1792, %v1791, %v1790
    %v1803 = vrot.slane %v1614, 7
    %v1804 = vsel %vm1774, %v1803, %v1613
    %v1805 = vrot.slane %v1615, 6
    %v1806 = vsel %vm1777, %v1805, %v1804
    %v1807 = vrot.slane %v1616, 5
    %v1808 = vsel %vm1780, %v1807, %v1806
    %v1809 = vrot.slane %v1617, 4
    %v1810 = vsel %vm1783, %v1809, %v1808
    %v1811 = vrot.slane %v1618, 3
    %v1812 = vsel %vm1786, %v1811, %v1810
    %v1813 = vrot.slane %v1619, 2
    %v1814 = vsel %vm1789, %v1813, %v1812
    %v1815 = vrot.slane %v1620, 1
    %v1816 = vsel %vm1792, %v1815, %v1814
    %1817 = vrot.lane.b32.xlu0 %v1816, 64
    %v1818 = vpop.permute.xlu0 %1817
    %v1828 = vrot.slane %v1622, 7
    %v1829 = vsel %vm1774, %v1828, %v1621
    %v1830 = vrot.slane %v1623, 6
    %v1831 = vsel %vm1777, %v1830, %v1829
    %v1832 = vrot.slane %v1624, 5
    %v1833 = vsel %vm1780, %v1832, %v1831
    %v1834 = vrot.slane %v1625, 4
    %v1835 = vsel %vm1783, %v1834, %v1833
    %v1836 = vrot.slane %v1626, 3
    %v1837 = vsel %vm1786, %v1836, %v1835
    %v1838 = vrot.slane %v1627, 2
    %v1839 = vsel %vm1789, %v1838, %v1837
    %v1840 = vrot.slane %v1628, 1
    %v1841 = vsel %vm1792, %v1840, %v1839
    %v1851 = vrot.slane %v1630, 7
    %v1852 = vsel %vm1774, %v1851, %v1629
    %v1853 = vrot.slane %v1631, 6
    %v1854 = vsel %vm1777, %v1853, %v1852
    %v1855 = vrot.slane %v1632, 5
    %v1856 = vsel %vm1780, %v1855, %v1854
    %v1857 = vrot.slane %v1633, 4
    %v1858 = vsel %vm1783, %v1857, %v1856
    %v1859 = vrot.slane %v1634, 3
    %v1860 = vsel %vm1786, %v1859, %v1858
    %v1861 = vrot.slane %v1635, 2
    %v1862 = vsel %vm1789, %v1861, %v1860
    %v1863 = vrot.slane %v1636, 1
    %v1864 = vsel %vm1792, %v1863, %v1862
    %1865 = vrot.lane.b32.xlu0 %v1864, 64
    %v1866 = vpop.permute.xlu0 %1865
    %v1876 = vrot.slane %v1638, 7
    %v1877 = vsel %vm1774, %v1876, %v1637
    %v1878 = vrot.slane %v1639, 6
    %v1879 = vsel %vm1777, %v1878, %v1877
    %v1880 = vrot.slane %v1640, 5
    %v1881 = vsel %vm1780, %v1880, %v1879
    %v1882 = vrot.slane %v1641, 4
    %v1883 = vsel %vm1783, %v1882, %v1881
    %v1884 = vrot.slane %v1642, 3
    %v1885 = vsel %vm1786, %v1884, %v1883
    %v1886 = vrot.slane %v1643, 2
    %v1887 = vsel %vm1789, %v1886, %v1885
    %v1888 = vrot.slane %v1644, 1
    %v1889 = vsel %vm1792, %v1888, %v1887
    %v1899 = vrot.slane %v1646, 7
    %v1900 = vsel %vm1774, %v1899, %v1645
    %v1901 = vrot.slane %v1647, 6
    %v1902 = vsel %vm1777, %v1901, %v1900
    %v1903 = vrot.slane %v1648, 5
    %v1904 = vsel %vm1780, %v1903, %v1902
    %v1905 = vrot.slane %v1649, 4
    %v1906 = vsel %vm1783, %v1905, %v1904
    %v1907 = vrot.slane %v1650, 3
    %v1908 = vsel %vm1786, %v1907, %v1906
    %v1909 = vrot.slane %v1651, 2
    %v1910 = vsel %vm1789, %v1909, %v1908
    %v1911 = vrot.slane %v1652, 1
    %v1912 = vsel %vm1792, %v1911, %v1910
    %1913 = vrot.lane.b32.xlu0 %v1912, 64
    %v1914 = vpop.permute.xlu0 %1913
    %v1924 = vrot.slane %v1654, 7
    %v1925 = vsel %vm1774, %v1924, %v1653
    %v1926 = vrot.slane %v1655, 6
    %v1927 = vsel %vm1777, %v1926, %v1925
    %v1928 = vrot.slane %v1656, 5
    %v1929 = vsel %vm1780, %v1928, %v1927
    %v1930 = vrot.slane %v1657, 4
    %v1931 = vsel %vm1783, %v1930, %v1929
    %v1932 = vrot.slane %v1658, 3
    %v1933 = vsel %vm1786, %v1932, %v1931
    %v1934 = vrot.slane %v1659, 2
    %v1935 = vsel %vm1789, %v1934, %v1933
    %v1936 = vrot.slane %v1660, 1
    %v1937 = vsel %vm1792, %v1936, %v1935
    %v1947 = vrot.slane %v1662, 7
    %v1948 = vsel %vm1774, %v1947, %v1661
    %v1949 = vrot.slane %v1663, 6
    %v1950 = vsel %vm1777, %v1949, %v1948
    %v1951 = vrot.slane %v1664, 5
    %v1952 = vsel %vm1780, %v1951, %v1950
    %v1953 = vrot.slane %v1665, 4
    %v1954 = vsel %vm1783, %v1953, %v1952
    %v1955 = vrot.slane %v1666, 3
    %v1956 = vsel %vm1786, %v1955, %v1954
    %v1957 = vrot.slane %v1667, 2
    %v1958 = vsel %vm1789, %v1957, %v1956
    %v1959 = vrot.slane %v1668, 1
    %v1960 = vsel %vm1792, %v1959, %v1958
    %1961 = vrot.lane.b32.xlu0 %v1960, 64
    %v1962 = vpop.permute.xlu0 %1961
    %v1972 = vrot.slane %v1670, 7
    %v1973 = vsel %vm1774, %v1972, %v1669
    %v1974 = vrot.slane %v1671, 6
    %v1975 = vsel %vm1777, %v1974, %v1973
    %v1976 = vrot.slane %v1672, 5
    %v1977 = vsel %vm1780, %v1976, %v1975
    %v1978 = vrot.slane %v1673, 4
    %v1979 = vsel %vm1783, %v1978, %v1977
    %v1980 = vrot.slane %v1674, 3
    %v1981 = vsel %vm1786, %v1980, %v1979
    %v1982 = vrot.slane %v1675, 2
    %v1983 = vsel %vm1789, %v1982, %v1981
    %v1984 = vrot.slane %v1676, 1
    %v1985 = vsel %vm1792, %v1984, %v1983
    %v1995 = vrot.slane %v1678, 7
    %v1996 = vsel %vm1774, %v1995, %v1677
    %v1997 = vrot.slane %v1679, 6
    %v1998 = vsel %vm1777, %v1997, %v1996
    %v1999 = vrot.slane %v1680, 5
    %v2000 = vsel %vm1780, %v1999, %v1998
    %v2001 = vrot.slane %v1681, 4
    %v2002 = vsel %vm1783, %v2001, %v2000
    %v2003 = vrot.slane %v1682, 3
    %v2004 = vsel %vm1786, %v2003, %v2002
    %v2005 = vrot.slane %v1683, 2
    %v2006 = vsel %vm1789, %v2005, %v2004
    %v2007 = vrot.slane %v1684, 1
    %v2008 = vsel %vm1792, %v2007, %v2006
    %2009 = vrot.lane.b32.xlu0 %v2008, 64
    %v2010 = vpop.permute.xlu0 %2009
    %v2020 = vrot.slane %v1686, 7
    %v2021 = vsel %vm1774, %v2020, %v1685
    %v2022 = vrot.slane %v1687, 6
    %v2023 = vsel %vm1777, %v2022, %v2021
    %v2024 = vrot.slane %v1688, 5
    %v2025 = vsel %vm1780, %v2024, %v2023
    %v2026 = vrot.slane %v1689, 4
    %v2027 = vsel %vm1783, %v2026, %v2025
    %v2028 = vrot.slane %v1690, 3
    %v2029 = vsel %vm1786, %v2028, %v2027
    %v2030 = vrot.slane %v1691, 2
    %v2031 = vsel %vm1789, %v2030, %v2029
    %v2032 = vrot.slane %v1692, 1
    %v2033 = vsel %vm1792, %v2032, %v2031
    %v2043 = vrot.slane %v1694, 7
    %v2044 = vsel %vm1774, %v2043, %v1693
    %v2045 = vrot.slane %v1695, 6
    %v2046 = vsel %vm1777, %v2045, %v2044
    %v2047 = vrot.slane %v1696, 5
    %v2048 = vsel %vm1780, %v2047, %v2046
    %v2049 = vrot.slane %v1697, 4
    %v2050 = vsel %vm1783, %v2049, %v2048
    %v2051 = vrot.slane %v1698, 3
    %v2052 = vsel %vm1786, %v2051, %v2050
    %v2053 = vrot.slane %v1699, 2
    %v2054 = vsel %vm1789, %v2053, %v2052
    %v2055 = vrot.slane %v1700, 1
    %v2056 = vsel %vm1792, %v2055, %v2054
    %2057 = vrot.lane.b32.xlu0 %v2056, 64
    %v2058 = vpop.permute.xlu0 %2057
    %v2068 = vrot.slane %v1702, 7
    %v2069 = vsel %vm1774, %v2068, %v1701
    %v2070 = vrot.slane %v1703, 6
    %v2071 = vsel %vm1777, %v2070, %v2069
    %v2072 = vrot.slane %v1704, 5
    %v2073 = vsel %vm1780, %v2072, %v2071
    %v2074 = vrot.slane %v1705, 4
    %v2075 = vsel %vm1783, %v2074, %v2073
    %v2076 = vrot.slane %v1706, 3
    %v2077 = vsel %vm1786, %v2076, %v2075
    %v2078 = vrot.slane %v1707, 2
    %v2079 = vsel %vm1789, %v2078, %v2077
    %v2080 = vrot.slane %v1708, 1
    %v2081 = vsel %vm1792, %v2080, %v2079
    %v2091 = vrot.slane %v1710, 7
    %v2092 = vsel %vm1774, %v2091, %v1709
    %v2093 = vrot.slane %v1711, 6
    %v2094 = vsel %vm1777, %v2093, %v2092
    %v2095 = vrot.slane %v1712, 5
    %v2096 = vsel %vm1780, %v2095, %v2094
    %v2097 = vrot.slane %v1713, 4
    %v2098 = vsel %vm1783, %v2097, %v2096
    %v2099 = vrot.slane %v1714, 3
    %v2100 = vsel %vm1786, %v2099, %v2098
    %v2101 = vrot.slane %v1715, 2
    %v2102 = vsel %vm1789, %v2101, %v2100
    %v2103 = vrot.slane %v1716, 1
    %v2104 = vsel %vm1792, %v2103, %v2102
    %2105 = vrot.lane.b32.xlu0 %v2104, 64
    %v2106 = vpop.permute.xlu0 %2105
    %v2116 = vrot.slane %v1718, 7
    %v2117 = vsel %vm1774, %v2116, %v1717
    %v2118 = vrot.slane %v1719, 6
    %v2119 = vsel %vm1777, %v2118, %v2117
    %v2120 = vrot.slane %v1720, 5
    %v2121 = vsel %vm1780, %v2120, %v2119
    %v2122 = vrot.slane %v1721, 4
    %v2123 = vsel %vm1783, %v2122, %v2121
    %v2124 = vrot.slane %v1722, 3
    %v2125 = vsel %vm1786, %v2124, %v2123
    %v2126 = vrot.slane %v1723, 2
    %v2127 = vsel %vm1789, %v2126, %v2125
    %v2128 = vrot.slane %v1724, 1
    %v2129 = vsel %vm1792, %v2128, %v2127
    %v2139 = vrot.slane %v1726, 7
    %v2140 = vsel %vm1774, %v2139, %v1725
    %v2141 = vrot.slane %v1727, 6
    %v2142 = vsel %vm1777, %v2141, %v2140
    %v2143 = vrot.slane %v1728, 5
    %v2144 = vsel %vm1780, %v2143, %v2142
    %v2145 = vrot.slane %v1729, 4
    %v2146 = vsel %vm1783, %v2145, %v2144
    %v2147 = vrot.slane %v1730, 3
    %v2148 = vsel %vm1786, %v2147, %v2146
    %v2149 = vrot.slane %v1731, 2
    %v2150 = vsel %vm1789, %v2149, %v2148
    %v2151 = vrot.slane %v1732, 1
    %v2152 = vsel %vm1792, %v2151, %v2150
    %2153 = vrot.lane.b32.xlu0 %v2152, 64
    %v2154 = vpop.permute.xlu0 %2153
    %v2156 = vsel %vm555, %v1793, %v1818
    %v2157 = vsel %vm555, %v1841, %v1866
    %v2158 = vsel %vm555, %v1889, %v1914
    %v2159 = vsel %vm555, %v1937, %v1962
    %v2160 = vsel %vm555, %v1985, %v2010
    %v2161 = vsel %vm555, %v2033, %v2058
    %v2162 = vsel %vm555, %v2081, %v2106
    %v2163 = vsel %vm555, %v2129, %v2154
    %v2172 = vrot.slane %v1734, 7
    %v2173 = vsel %vm1774, %v2172, %v1733
    %v2174 = vrot.slane %v1735, 6
    %v2175 = vsel %vm1777, %v2174, %v2173
    %v2176 = vrot.slane %v1736, 5
    %v2177 = vsel %vm1780, %v2176, %v2175
    %v2178 = vrot.slane %v1737, 4
    %v2179 = vsel %vm1783, %v2178, %v2177
    %v2180 = vrot.slane %v1738, 3
    %v2181 = vsel %vm1786, %v2180, %v2179
    %v2182 = vrot.slane %v1739, 2
    %v2183 = vsel %vm1789, %v2182, %v2181
    %v2184 = vrot.slane %v1740, 1
    %v2185 = vsel %vm1792, %v2184, %v2183
    %v2195 = vrot.slane %v1742, 7
    %v2196 = vsel %vm1774, %v2195, %v1741
    %v2197 = vrot.slane %v1743, 6
    %v2198 = vsel %vm1777, %v2197, %v2196
    %v2199 = vrot.slane %v1744, 5
    %v2200 = vsel %vm1780, %v2199, %v2198
    %v2201 = vrot.slane %v1745, 4
    %v2202 = vsel %vm1783, %v2201, %v2200
    %v2203 = vrot.slane %v1746, 3
    %v2204 = vsel %vm1786, %v2203, %v2202
    %v2205 = vrot.slane %v1747, 2
    %v2206 = vsel %vm1789, %v2205, %v2204
    %v2207 = vrot.slane %v1748, 1
    %v2208 = vsel %vm1792, %v2207, %v2206
    %2209 = vrot.lane.b32.xlu0 %v2208, 64
    %v2210 = vpop.permute.xlu0 %2209
    %v2220 = vrot.slane %v1750, 7
    %v2221 = vsel %vm1774, %v2220, %v1749
    %v2222 = vrot.slane %v1751, 6
    %v2223 = vsel %vm1777, %v2222, %v2221
    %v2224 = vrot.slane %v1752, 5
    %v2225 = vsel %vm1780, %v2224, %v2223
    %v2226 = vrot.slane %v1753, 4
    %v2227 = vsel %vm1783, %v2226, %v2225
    %v2228 = vrot.slane %v1754, 3
    %v2229 = vsel %vm1786, %v2228, %v2227
    %v2230 = vrot.slane %v1755, 2
    %v2231 = vsel %vm1789, %v2230, %v2229
    %v2232 = vrot.slane %v1756, 1
    %v2233 = vsel %vm1792, %v2232, %v2231
    %v2243 = vrot.slane %v1758, 7
    %v2244 = vsel %vm1774, %v2243, %v1757
    %v2245 = vrot.slane %v1759, 6
    %v2246 = vsel %vm1777, %v2245, %v2244
    %v2247 = vrot.slane %v1760, 5
    %v2248 = vsel %vm1780, %v2247, %v2246
    %v2249 = vrot.slane %v1761, 4
    %v2250 = vsel %vm1783, %v2249, %v2248
    %v2251 = vrot.slane %v1762, 3
    %v2252 = vsel %vm1786, %v2251, %v2250
    %v2253 = vrot.slane %v1763, 2
    %v2254 = vsel %vm1789, %v2253, %v2252
    %v2255 = vrot.slane %v1764, 1
    %v2256 = vsel %vm1792, %v2255, %v2254
    %2257 = vrot.lane.b32.xlu0 %v2256, 64
    %v2258 = vpop.permute.xlu0 %2257
    %v2260 = vsel %vm555, %v2185, %v2210
    %v2261 = vsel %vm555, %v2233, %v2258
    %v2262 = vpack.c.bf16 %v2156, %v2156
    %v2263 = vpack.c.bf16 %v2157, %v2157
    %v2264 = vpack.c.bf16 %v2158, %v2158
    %v2265 = vpack.c.bf16 %v2159, %v2159
    %v2266 = vpack.c.bf16 %v2160, %v2160
    %v2267 = vpack.c.bf16 %v2161, %v2161
    %v2268 = vpack.c.bf16 %v2162, %v2162
    %v2269 = vpack.c.bf16 %v2163, %v2163
    %v2270 = vpack.c.bf16 %v2260, %v2260
    %v2271 = vpack.c.bf16 %v2261, %v2261
    %v2272 = vld [vmem:[#allocation3] sm:$0xf]
    %v2273 = vld [vmem:[#allocation3 + $0x4] sm:$0xf]
    %v2274 = vld [vmem:[#allocation3 + $0x8] sm:$0xf]
    %v2275 = vld [vmem:[#allocation3 + $0xc] sm:$0xf]
    %v2276 = vld [vmem:[#allocation3 + $0x10] sm:$0xf]
    %v2277 = vld [vmem:[#allocation3 + $0x14] sm:$0xf]
    %v2278 = vld [vmem:[#allocation3 + $0x18] sm:$0xf]
    %v2279 = vld [vmem:[#allocation3 + $0x1c] sm:$0xf]
    %v2280 = vld [vmem:[#allocation3 + $0x20] sm:$0xf]
    %v2281 = vld [vmem:[#allocation3 + $0x24] sm:$0xf]
    %v2282 = vld [vmem:[#allocation3 + $0x28] sm:$0xf]
    %v2283 = vld [vmem:[#allocation3 + $0x2c] sm:$0xf]
    %v2284 = vld [vmem:[#allocation3 + $0x30] sm:$0xf]
    %v2285 = vld [vmem:[#allocation3 + $0x34] sm:$0xf]
    %v2286 = vld [vmem:[#allocation3 + $0x38] sm:$0xf]
    %v2287 = vld [vmem:[#allocation3 + $0x3c] sm:$0xf]
    %v2288 = vld [vmem:[#allocation3 + $0x40] sm:$0xf]
    %v2289 = vld [vmem:[#allocation3 + $0x44] sm:$0xf]
    %v2290 = vld [vmem:[#allocation3 + $0x48] sm:$0xf]
    %v2291 = vld [vmem:[#allocation3 + $0x4c] sm:$0xf]
    %v2292 = vld [vmem:[#allocation3 + $0x50] sm:$0xf]
    %v2293 = vld [vmem:[#allocation3 + $0x54] sm:$0xf]
    %v2294 = vld [vmem:[#allocation3 + $0x58] sm:$0xf]
    %v2295 = vld [vmem:[#allocation3 + $0x5c] sm:$0xf]
    %v2296 = vld [vmem:[#allocation3 + $0x60] sm:$0xf]
    %v2297 = vld [vmem:[#allocation3 + $0x64] sm:$0xf]
    %v2298 = vld [vmem:[#allocation3 + $0x68] sm:$0xf]
    %v2299 = vld [vmem:[#allocation3 + $0x6c] sm:$0xf]
    %v2300 = vld [vmem:[#allocation3 + $0x70] sm:$0xf]
    %v2301 = vld [vmem:[#allocation3 + $0x74] sm:$0xf]
    %v2302 = vld [vmem:[#allocation3 + $0x78] sm:$0xf]
    %v2303 = vld [vmem:[#allocation3 + $0x7c] sm:$0xf]
    %v2304 = vld [vmem:[#allocation3 + $0x80] sm:$0xf]
    %v2305 = vld [vmem:[#allocation3 + $0x84] sm:$0xf]
    %v2306 = vld [vmem:[#allocation3 + $0x88] sm:$0xf]
    %v2307 = vld [vmem:[#allocation3 + $0x8c] sm:$0xf]
    %v2308 = vld [vmem:[#allocation3 + $0x90] sm:$0xf]
    %v2309 = vld [vmem:[#allocation3 + $0x94] sm:$0xf]
    %v2310 = vld [vmem:[#allocation3 + $0x98] sm:$0xf]
    %v2311 = vld [vmem:[#allocation3 + $0x9c] sm:$0xf]
    %v2312 = vld [vmem:[#allocation3 + $0xa0] sm:$0xf]
    %v2313 = vld [vmem:[#allocation3 + $0xa4] sm:$0xf]
    %v2314 = vld [vmem:[#allocation3 + $0xa8] sm:$0xf]
    %v2315 = vld [vmem:[#allocation3 + $0xac] sm:$0xf]
    %v2316 = vld [vmem:[#allocation3 + $0xb0] sm:$0xf]
    %v2317 = vld [vmem:[#allocation3 + $0xb4] sm:$0xf]
    %v2318 = vld [vmem:[#allocation3 + $0xb8] sm:$0xf]
    %v2319 = vld [vmem:[#allocation3 + $0xbc] sm:$0xf]
    %v2320 = vld [vmem:[#allocation3 + $0xc0] sm:$0xf]
    %v2321 = vld [vmem:[#allocation3 + $0xc4] sm:$0xf]
    %v2322 = vld [vmem:[#allocation3 + $0xc8] sm:$0xf]
    %v2323 = vld [vmem:[#allocation3 + $0xcc] sm:$0xf]
    %v2324 = vld [vmem:[#allocation3 + $0xd0] sm:$0xf]
    %v2325 = vld [vmem:[#allocation3 + $0xd4] sm:$0xf]
    %v2326 = vld [vmem:[#allocation3 + $0xd8] sm:$0xf]
    %v2327 = vld [vmem:[#allocation3 + $0xdc] sm:$0xf]
    %v2328 = vld [vmem:[#allocation3 + $0xe0] sm:$0xf]
    %v2329 = vld [vmem:[#allocation3 + $0xe4] sm:$0xf]
    %v2330 = vld [vmem:[#allocation3 + $0xe8] sm:$0xf]
    %v2331 = vld [vmem:[#allocation3 + $0xec] sm:$0xf]
    %v2332 = vld [vmem:[#allocation3 + $0xf0] sm:$0xf]
    %v2333 = vld [vmem:[#allocation3 + $0xf4] sm:$0xf]
    %v2334 = vld [vmem:[#allocation3 + $0xf8] sm:$0xf]
    %v2335 = vld [vmem:[#allocation3 + $0xfc] sm:$0xf]
    %v2336 = vld [vmem:[#allocation3 + $0x100] sm:$0xf]
    %v2337 = vld [vmem:[#allocation3 + $0x104] sm:$0xf]
    %v2338 = vld [vmem:[#allocation3 + $0x108] sm:$0xf]
    %v2339 = vld [vmem:[#allocation3 + $0x10c] sm:$0xf]
    %v2340 = vld [vmem:[#allocation3 + $0x110] sm:$0xf]
    %v2341 = vld [vmem:[#allocation3 + $0x114] sm:$0xf]
    %v2342 = vld [vmem:[#allocation3 + $0x118] sm:$0xf]
    %v2343 = vld [vmem:[#allocation3 + $0x11c] sm:$0xf]
    %v2344 = vld [vmem:[#allocation3 + $0x120] sm:$0xf]
    %v2345 = vld [vmem:[#allocation3 + $0x124] sm:$0xf]
    %v2346 = vld [vmem:[#allocation3 + $0x128] sm:$0xf]
    %v2347 = vld [vmem:[#allocation3 + $0x12c] sm:$0xf]
    %v2348 = vld [vmem:[#allocation3 + $0x130] sm:$0xf]
    %v2349 = vld [vmem:[#allocation3 + $0x134] sm:$0xf]
    %v2350 = vld [vmem:[#allocation3 + $0x138] sm:$0xf]
    %v2351 = vld [vmem:[#allocation3 + $0x13c] sm:$0xf]
    %v2352 = vld [vmem:[#allocation3 + $0x140] sm:$0xf]
    %v2353 = vld [vmem:[#allocation3 + $0x144] sm:$0xf]
    %v2354 = vld [vmem:[#allocation3 + $0x148] sm:$0xf]
    %v2355 = vld [vmem:[#allocation3 + $0x14c] sm:$0xf]
    %v2356 = vld [vmem:[#allocation3 + $0x150] sm:$0xf]
    %v2357 = vld [vmem:[#allocation3 + $0x154] sm:$0xf]
    %v2358 = vld [vmem:[#allocation3 + $0x158] sm:$0xf]
    %v2359 = vld [vmem:[#allocation3 + $0x15c] sm:$0xf]
    %v2360 = vld [vmem:[#allocation3 + $0x160] sm:$0xf]
    %v2361 = vld [vmem:[#allocation3 + $0x164] sm:$0xf]
    %v2362 = vld [vmem:[#allocation3 + $0x168] sm:$0xf]
    %v2363 = vld [vmem:[#allocation3 + $0x16c] sm:$0xf]
    %v2364 = vld [vmem:[#allocation3 + $0x170] sm:$0xf]
    %v2365 = vld [vmem:[#allocation3 + $0x174] sm:$0xf]
    %v2366 = vld [vmem:[#allocation3 + $0x178] sm:$0xf]
    %v2367 = vld [vmem:[#allocation3 + $0x17c] sm:$0xf]
    %v2368 = vld [vmem:[#allocation3 + $0x180] sm:$0xf]
    %v2369 = vld [vmem:[#allocation3 + $0x184] sm:$0xf]
    %v2370 = vld [vmem:[#allocation3 + $0x188] sm:$0xf]
    %v2371 = vld [vmem:[#allocation3 + $0x18c] sm:$0xf]
    %v2372 = vld [vmem:[#allocation3 + $0x190] sm:$0xf]
    %v2373 = vld [vmem:[#allocation3 + $0x194] sm:$0xf]
    %v2374 = vld [vmem:[#allocation3 + $0x198] sm:$0xf]
    %v2375 = vld [vmem:[#allocation3 + $0x19c] sm:$0xf]
    %v2376 = vld [vmem:[#allocation3 + $0x1a0] sm:$0xf]
    %v2377 = vld [vmem:[#allocation3 + $0x1a4] sm:$0xf]
    %v2378 = vld [vmem:[#allocation3 + $0x1a8] sm:$0xf]
    %v2379 = vld [vmem:[#allocation3 + $0x1ac] sm:$0xf]
    %v2380 = vld [vmem:[#allocation3 + $0x1b0] sm:$0xf]
    %v2381 = vld [vmem:[#allocation3 + $0x1b4] sm:$0xf]
    %v2382 = vld [vmem:[#allocation3 + $0x1b8] sm:$0xf]
    %v2383 = vld [vmem:[#allocation3 + $0x1bc] sm:$0xf]
    %v2384 = vld [vmem:[#allocation3 + $0x1c0] sm:$0xf]
    %v2385 = vld [vmem:[#allocation3 + $0x1c4] sm:$0xf]
    %v2386 = vld [vmem:[#allocation3 + $0x1c8] sm:$0xf]
    %v2387 = vld [vmem:[#allocation3 + $0x1cc] sm:$0xf]
    %v2388 = vld [vmem:[#allocation3 + $0x1d0] sm:$0xf]
    %v2389 = vld [vmem:[#allocation3 + $0x1d4] sm:$0xf]
    %v2390 = vld [vmem:[#allocation3 + $0x1d8] sm:$0xf]
    %v2391 = vld [vmem:[#allocation3 + $0x1dc] sm:$0xf]
    %v2392 = vld [vmem:[#allocation3 + $0x1e0] sm:$0xf]
    %v2393 = vld [vmem:[#allocation3 + $0x1e4] sm:$0xf]
    %v2394 = vld [vmem:[#allocation3 + $0x1e8] sm:$0xf]
    %v2395 = vld [vmem:[#allocation3 + $0x1ec] sm:$0xf]
    %v2396 = vld [vmem:[#allocation3 + $0x1f0] sm:$0xf]
    %v2397 = vld [vmem:[#allocation3 + $0x1f4] sm:$0xf]
    %v2398 = vld [vmem:[#allocation3 + $0x1f8] sm:$0xf]
    %v2399 = vld [vmem:[#allocation3 + $0x1fc] sm:$0xf]
    %v2400 = vld [vmem:[#allocation3 + $0x200] sm:$0xf]
    %v2401 = vld [vmem:[#allocation3 + $0x204] sm:$0xf]
    %v2402 = vld [vmem:[#allocation3 + $0x208] sm:$0xf]
    %v2403 = vld [vmem:[#allocation3 + $0x20c] sm:$0xf]
    %v2404 = vld [vmem:[#allocation3 + $0x210] sm:$0xf]
    %v2405 = vld [vmem:[#allocation3 + $0x214] sm:$0xf]
    %v2406 = vld [vmem:[#allocation3 + $0x218] sm:$0xf]
    %v2407 = vld [vmem:[#allocation3 + $0x21c] sm:$0xf]
    %v2408 = vld [vmem:[#allocation3 + $0x220] sm:$0xf]
    %v2409 = vld [vmem:[#allocation3 + $0x224] sm:$0xf]
    %v2410 = vld [vmem:[#allocation3 + $0x228] sm:$0xf]
    %v2411 = vld [vmem:[#allocation3 + $0x22c] sm:$0xf]
    %v2412 = vld [vmem:[#allocation3 + $0x230] sm:$0xf]
    %v2413 = vld [vmem:[#allocation3 + $0x234] sm:$0xf]
    %v2414 = vld [vmem:[#allocation3 + $0x238] sm:$0xf]
    %v2415 = vld [vmem:[#allocation3 + $0x23c] sm:$0xf]
    %v2416 = vld [vmem:[#allocation3 + $0x240] sm:$0xf]
    %v2417 = vld [vmem:[#allocation3 + $0x244] sm:$0xf]
    %v2418 = vld [vmem:[#allocation3 + $0x248] sm:$0xf]
    %v2419 = vld [vmem:[#allocation3 + $0x24c] sm:$0xf]
    %v2420 = vld [vmem:[#allocation3 + $0x250] sm:$0xf]
    %v2421 = vld [vmem:[#allocation3 + $0x254] sm:$0xf]
    %v2422 = vld [vmem:[#allocation3 + $0x258] sm:$0xf]
    %v2423 = vld [vmem:[#allocation3 + $0x25c] sm:$0xf]
    %v2424 = vld [vmem:[#allocation3 + $0x260] sm:$0xf]
    %v2425 = vld [vmem:[#allocation3 + $0x264] sm:$0xf]
    %v2426 = vld [vmem:[#allocation3 + $0x268] sm:$0xf]
    %v2427 = vld [vmem:[#allocation3 + $0x26c] sm:$0xf]
    %v2428 = vld [vmem:[#allocation3 + $0x270] sm:$0xf]
    %v2429 = vld [vmem:[#allocation3 + $0x274] sm:$0xf]
    %v2430 = vld [vmem:[#allocation3 + $0x278] sm:$0xf]
    %v2431 = vld [vmem:[#allocation3 + $0x27c] sm:$0xf]
    %v2432 = vld [vmem:[%s6] sm:$0x1]
    %v2434 = vlaneseq
    %v2435 = vshrl.u32 %v2434, 7
    %v2436 = vsub.s32 0, %v2435
    %v2437 = vrot.slane %v2432, %v2436
    %v2599 = vunpack.c.l.b16 %v2272
    %v2600 = vunpack.c.l.b16 %v2273
    %v2601 = vunpack.c.l.b16 %v2274
    %v2602 = vunpack.c.l.b16 %v2275
    %v2603 = vunpack.c.l.b16 %v2276
    %v2604 = vunpack.c.l.b16 %v2277
    %v2605 = vunpack.c.l.b16 %v2278
    %v2606 = vunpack.c.l.b16 %v2279
    %v2607 = vunpack.c.l.b16 %v2280
    %v2608 = vunpack.c.l.b16 %v2281
    %v2609 = vunpack.c.l.b16 %v2282
    %v2610 = vunpack.c.l.b16 %v2283
    %v2611 = vunpack.c.l.b16 %v2284
    %v2612 = vunpack.c.l.b16 %v2285
    %v2613 = vunpack.c.l.b16 %v2286
    %v2614 = vunpack.c.l.b16 %v2287
    %v2615 = vunpack.c.l.b16 %v2288
    %v2616 = vunpack.c.l.b16 %v2289
    %v2617 = vunpack.c.l.b16 %v2290
    %v2618 = vunpack.c.l.b16 %v2291
    %v2619 = vunpack.c.l.b16 %v2292
    %v2620 = vunpack.c.l.b16 %v2293
    %v2621 = vunpack.c.l.b16 %v2294
    %v2622 = vunpack.c.l.b16 %v2295
    %v2623 = vunpack.c.l.b16 %v2296
    %v2624 = vunpack.c.l.b16 %v2297
    %v2625 = vunpack.c.l.b16 %v2298
    %v2626 = vunpack.c.l.b16 %v2299
    %v2627 = vunpack.c.l.b16 %v2300
    %v2628 = vunpack.c.l.b16 %v2301
    %v2629 = vunpack.c.l.b16 %v2302
    %v2630 = vunpack.c.l.b16 %v2303
    %v2631 = vunpack.c.l.b16 %v2304
    %v2632 = vunpack.c.l.b16 %v2305
    %v2633 = vunpack.c.l.b16 %v2306
    %v2634 = vunpack.c.l.b16 %v2307
    %v2635 = vunpack.c.l.b16 %v2308
    %v2636 = vunpack.c.l.b16 %v2309
    %v2637 = vunpack.c.l.b16 %v2310
    %v2638 = vunpack.c.l.b16 %v2311
    %v2639 = vunpack.c.l.b16 %v2312
    %v2640 = vunpack.c.l.b16 %v2313
    %v2641 = vunpack.c.l.b16 %v2314
    %v2642 = vunpack.c.l.b16 %v2315
    %v2643 = vunpack.c.l.b16 %v2316
    %v2644 = vunpack.c.l.b16 %v2317
    %v2645 = vunpack.c.l.b16 %v2318
    %v2646 = vunpack.c.l.b16 %v2319
    %v2647 = vunpack.c.l.b16 %v2320
    %v2648 = vunpack.c.l.b16 %v2321
    %v2649 = vunpack.c.l.b16 %v2322
    %v2650 = vunpack.c.l.b16 %v2323
    %v2651 = vunpack.c.l.b16 %v2324
    %v2652 = vunpack.c.l.b16 %v2325
    %v2653 = vunpack.c.l.b16 %v2326
    %v2654 = vunpack.c.l.b16 %v2327
    %v2655 = vunpack.c.l.b16 %v2328
    %v2656 = vunpack.c.l.b16 %v2329
    %v2657 = vunpack.c.l.b16 %v2330
    %v2658 = vunpack.c.l.b16 %v2331
    %v2659 = vunpack.c.l.b16 %v2332
    %v2660 = vunpack.c.l.b16 %v2333
    %v2661 = vunpack.c.l.b16 %v2334
    %v2662 = vunpack.c.l.b16 %v2335
    %v2663 = vunpack.c.l.b16 %v2336
    %v2664 = vunpack.c.l.b16 %v2337
    %v2665 = vunpack.c.l.b16 %v2338
    %v2666 = vunpack.c.l.b16 %v2339
    %v2667 = vunpack.c.l.b16 %v2340
    %v2668 = vunpack.c.l.b16 %v2341
    %v2669 = vunpack.c.l.b16 %v2342
    %v2670 = vunpack.c.l.b16 %v2343
    %v2671 = vunpack.c.l.b16 %v2344
    %v2672 = vunpack.c.l.b16 %v2345
    %v2673 = vunpack.c.l.b16 %v2346
    %v2674 = vunpack.c.l.b16 %v2347
    %v2675 = vunpack.c.l.b16 %v2348
    %v2676 = vunpack.c.l.b16 %v2349
    %v2677 = vunpack.c.l.b16 %v2350
    %v2678 = vunpack.c.l.b16 %v2351
    %v2679 = vunpack.c.l.b16 %v2352
    %v2680 = vunpack.c.l.b16 %v2353
    %v2681 = vunpack.c.l.b16 %v2354
    %v2682 = vunpack.c.l.b16 %v2355
    %v2683 = vunpack.c.l.b16 %v2356
    %v2684 = vunpack.c.l.b16 %v2357
    %v2685 = vunpack.c.l.b16 %v2358
    %v2686 = vunpack.c.l.b16 %v2359
    %v2687 = vunpack.c.l.b16 %v2360
    %v2688 = vunpack.c.l.b16 %v2361
    %v2689 = vunpack.c.l.b16 %v2362
    %v2690 = vunpack.c.l.b16 %v2363
    %v2691 = vunpack.c.l.b16 %v2364
    %v2692 = vunpack.c.l.b16 %v2365
    %v2693 = vunpack.c.l.b16 %v2366
    %v2694 = vunpack.c.l.b16 %v2367
    %v2695 = vunpack.c.l.b16 %v2368
    %v2696 = vunpack.c.l.b16 %v2369
    %v2697 = vunpack.c.l.b16 %v2370
    %v2698 = vunpack.c.l.b16 %v2371
    %v2699 = vunpack.c.l.b16 %v2372
    %v2700 = vunpack.c.l.b16 %v2373
    %v2701 = vunpack.c.l.b16 %v2374
    %v2702 = vunpack.c.l.b16 %v2375
    %v2703 = vunpack.c.l.b16 %v2376
    %v2704 = vunpack.c.l.b16 %v2377
    %v2705 = vunpack.c.l.b16 %v2378
    %v2706 = vunpack.c.l.b16 %v2379
    %v2707 = vunpack.c.l.b16 %v2380
    %v2708 = vunpack.c.l.b16 %v2381
    %v2709 = vunpack.c.l.b16 %v2382
    %v2710 = vunpack.c.l.b16 %v2383
    %v2711 = vunpack.c.l.b16 %v2384
    %v2712 = vunpack.c.l.b16 %v2385
    %v2713 = vunpack.c.l.b16 %v2386
    %v2714 = vunpack.c.l.b16 %v2387
    %v2715 = vunpack.c.l.b16 %v2388
    %v2716 = vunpack.c.l.b16 %v2389
    %v2717 = vunpack.c.l.b16 %v2390
    %v2718 = vunpack.c.l.b16 %v2391
    %v2719 = vunpack.c.l.b16 %v2392
    %v2720 = vunpack.c.l.b16 %v2393
    %v2721 = vunpack.c.l.b16 %v2394
    %v2722 = vunpack.c.l.b16 %v2395
    %v2723 = vunpack.c.l.b16 %v2396
    %v2724 = vunpack.c.l.b16 %v2397
    %v2725 = vunpack.c.l.b16 %v2398
    %v2726 = vunpack.c.l.b16 %v2399
    %v2727 = vunpack.c.l.b16 %v2400
    %v2728 = vunpack.c.l.b16 %v2401
    %v2729 = vunpack.c.l.b16 %v2402
    %v2730 = vunpack.c.l.b16 %v2403
    %v2731 = vunpack.c.l.b16 %v2404
    %v2732 = vunpack.c.l.b16 %v2405
    %v2733 = vunpack.c.l.b16 %v2406
    %v2734 = vunpack.c.l.b16 %v2407
    %v2735 = vunpack.c.l.b16 %v2408
    %v2736 = vunpack.c.l.b16 %v2409
    %v2737 = vunpack.c.l.b16 %v2410
    %v2738 = vunpack.c.l.b16 %v2411
    %v2739 = vunpack.c.l.b16 %v2412
    %v2740 = vunpack.c.l.b16 %v2413
    %v2741 = vunpack.c.l.b16 %v2414
    %v2742 = vunpack.c.l.b16 %v2415
    %v2743 = vunpack.c.l.b16 %v2416
    %v2744 = vunpack.c.l.b16 %v2417
    %v2745 = vunpack.c.l.b16 %v2418
    %v2746 = vunpack.c.l.b16 %v2419
    %v2747 = vunpack.c.l.b16 %v2420
    %v2748 = vunpack.c.l.b16 %v2421
    %v2749 = vunpack.c.l.b16 %v2422
    %v2750 = vunpack.c.l.b16 %v2423
    %v2751 = vunpack.c.l.b16 %v2424
    %v2752 = vunpack.c.l.b16 %v2425
    %v2753 = vunpack.c.l.b16 %v2426
    %v2754 = vunpack.c.l.b16 %v2427
    %v2755 = vunpack.c.l.b16 %v2428
    %v2756 = vunpack.c.l.b16 %v2429
    %v2757 = vunpack.c.l.b16 %v2430
    %v2758 = vunpack.c.l.b16 %v2431
    %v2759 = vpack.c.b16 %v2600, %v2599
    %v2760 = vpack.c.b16 %v2602, %v2601
    %v2761 = vpack.c.b16 %v2604, %v2603
    %v2762 = vpack.c.b16 %v2606, %v2605
    %v2763 = vpack.c.b16 %v2608, %v2607
    %v2764 = vpack.c.b16 %v2610, %v2609
    %v2765 = vpack.c.b16 %v2612, %v2611
    %v2766 = vpack.c.b16 %v2614, %v2613
    %v2767 = vpack.c.b16 %v2616, %v2615
    %v2768 = vpack.c.b16 %v2618, %v2617
    %v2769 = vpack.c.b16 %v2620, %v2619
    %v2770 = vpack.c.b16 %v2622, %v2621
    %v2771 = vpack.c.b16 %v2624, %v2623
    %v2772 = vpack.c.b16 %v2626, %v2625
    %v2773 = vpack.c.b16 %v2628, %v2627
    %v2774 = vpack.c.b16 %v2630, %v2629
    %v2775 = vpack.c.b16 %v2632, %v2631
    %v2776 = vpack.c.b16 %v2634, %v2633
    %v2777 = vpack.c.b16 %v2636, %v2635
    %v2778 = vpack.c.b16 %v2638, %v2637
    %v2779 = vpack.c.b16 %v2640, %v2639
    %v2780 = vpack.c.b16 %v2642, %v2641
    %v2781 = vpack.c.b16 %v2644, %v2643
    %v2782 = vpack.c.b16 %v2646, %v2645
    %v2783 = vpack.c.b16 %v2648, %v2647
    %v2784 = vpack.c.b16 %v2650, %v2649
    %v2785 = vpack.c.b16 %v2652, %v2651
    %v2786 = vpack.c.b16 %v2654, %v2653
    %v2787 = vpack.c.b16 %v2656, %v2655
    %v2788 = vpack.c.b16 %v2658, %v2657
    %v2789 = vpack.c.b16 %v2660, %v2659
    %v2790 = vpack.c.b16 %v2662, %v2661
    %v2791 = vpack.c.b16 %v2664, %v2663
    %v2792 = vpack.c.b16 %v2666, %v2665
    %v2793 = vpack.c.b16 %v2668, %v2667
    %v2794 = vpack.c.b16 %v2670, %v2669
    %v2795 = vpack.c.b16 %v2672, %v2671
    %v2796 = vpack.c.b16 %v2674, %v2673
    %v2797 = vpack.c.b16 %v2676, %v2675
    %v2798 = vpack.c.b16 %v2678, %v2677
    %v2799 = vpack.c.b16 %v2680, %v2679
    %v2800 = vpack.c.b16 %v2682, %v2681
    %v2801 = vpack.c.b16 %v2684, %v2683
    %v2802 = vpack.c.b16 %v2686, %v2685
    %v2803 = vpack.c.b16 %v2688, %v2687
    %v2804 = vpack.c.b16 %v2690, %v2689
    %v2805 = vpack.c.b16 %v2692, %v2691
    %v2806 = vpack.c.b16 %v2694, %v2693
    %v2807 = vpack.c.b16 %v2696, %v2695
    %v2808 = vpack.c.b16 %v2698, %v2697
    %v2809 = vpack.c.b16 %v2700, %v2699
    %v2810 = vpack.c.b16 %v2702, %v2701
    %v2811 = vpack.c.b16 %v2704, %v2703
    %v2812 = vpack.c.b16 %v2706, %v2705
    %v2813 = vpack.c.b16 %v2708, %v2707
    %v2814 = vpack.c.b16 %v2710, %v2709
    %v2815 = vpack.c.b16 %v2712, %v2711
    %v2816 = vpack.c.b16 %v2714, %v2713
    %v2817 = vpack.c.b16 %v2716, %v2715
    %v2818 = vpack.c.b16 %v2718, %v2717
    %v2819 = vpack.c.b16 %v2720, %v2719
    %v2820 = vpack.c.b16 %v2722, %v2721
    %v2821 = vpack.c.b16 %v2724, %v2723
    %v2822 = vpack.c.b16 %v2726, %v2725
    %v2823 = vpack.c.b16 %v2728, %v2727
    %v2824 = vpack.c.b16 %v2730, %v2729
    %v2825 = vpack.c.b16 %v2732, %v2731
    %v2826 = vpack.c.b16 %v2734, %v2733
    %v2827 = vpack.c.b16 %v2736, %v2735
    %v2828 = vpack.c.b16 %v2738, %v2737
    %v2829 = vpack.c.b16 %v2740, %v2739
    %v2830 = vpack.c.b16 %v2742, %v2741
    %v2831 = vpack.c.b16 %v2744, %v2743
    %v2832 = vpack.c.b16 %v2746, %v2745
    %v2833 = vpack.c.b16 %v2748, %v2747
    %v2834 = vpack.c.b16 %v2750, %v2749
    %v2835 = vpack.c.b16 %v2752, %v2751
    %v2836 = vpack.c.b16 %v2754, %v2753
    %v2837 = vpack.c.b16 %v2756, %v2755
    %v2838 = vpack.c.b16 %v2758, %v2757
    %2919 = vmatprep.subr.bf16.mxu0 0
    %2920 = vmatpush1.bf16.msra.mxu0 %v2766
    %2921 = vmatprep.subr.bf16.mxu0 0
    %2922 = vmatpush1.bf16.msra.mxu0 %v2765
    %2923 = vmatprep.subr.bf16.mxu0 0
    %2924 = vmatpush1.bf16.msra.mxu0 %v2764
    %2925 = vmatprep.subr.bf16.mxu0 0
    %2926 = vmatpush1.bf16.msra.mxu0 %v2763
    %2927 = vmatprep.subr.bf16.mxu0 0
    %2928 = vmatpush1.bf16.msra.mxu0 %v2762
    %2929 = vmatprep.subr.bf16.mxu0 0
    %2930 = vmatpush1.bf16.msra.mxu0 %v2761
    %2931 = vmatprep.subr.bf16.mxu0 0
    %2932 = vmatpush1.bf16.msra.mxu0 %v2760
    %2933 = vmatprep.subr.bf16.mxu0 0
    %2934 = vmatpush1.bf16.msra.mxu0 %v2759
    %2935 = vmatprep.subr.bf16.mxu0 0
    %2936 = vmatpush2.bf16.msra.mxu0 %v2774
    %2937 = vmatprep.subr.bf16.mxu0 0
    %2938 = vmatpush2.bf16.msra.mxu0 %v2773
    %2939 = vmatprep.subr.bf16.mxu0 0
    %2940 = vmatpush2.bf16.msra.mxu0 %v2772
    %2941 = vmatprep.subr.bf16.mxu0 0
    %2942 = vmatpush2.bf16.msra.mxu0 %v2771
    %2943 = vmatprep.subr.bf16.mxu0 0
    %2944 = vmatpush2.bf16.msra.mxu0 %v2770
    %2945 = vmatprep.subr.bf16.mxu0 0
    %2946 = vmatpush2.bf16.msra.mxu0 %v2769
    %2947 = vmatprep.subr.bf16.mxu0 0
    %2948 = vmatpush2.bf16.msra.mxu0 %v2768
    %2949 = vmatprep.subr.bf16.mxu0 0
    %2950 = vmatpush2.bf16.msra.mxu0 %v2767
    %2951 = vmatprep.mubr.bf16.mxu0 %v2263
    %2952 = vmatmul.mubr.bf16.gmra.mxu0 %v2262
    %v2953 = vpop.f32.mrf.mxu0
    %v2954 = vadd.f32 %v2437, %v2953
    %v2955 = vpop.f32.mrf.mxu0
    %v2956 = vpop.f32.mrf.mxu0
    %v2957 = vpop.f32.mrf.mxu0
    %2958 = vdwg.mxu0
    %2959 = vmatprep.subr.bf16.mxu0 0
    %2960 = vmatpush1.bf16.msra.mxu0 %v2782
    %2961 = vmatprep.subr.bf16.mxu0 0
    %2962 = vmatpush1.bf16.msra.mxu0 %v2781
    %2963 = vmatprep.subr.bf16.mxu0 0
    %2964 = vmatpush1.bf16.msra.mxu0 %v2780
    %2965 = vmatprep.subr.bf16.mxu0 0
    %2966 = vmatpush1.bf16.msra.mxu0 %v2779
    %2967 = vmatprep.subr.bf16.mxu0 0
    %2968 = vmatpush1.bf16.msra.mxu0 %v2778
    %2969 = vmatprep.subr.bf16.mxu0 0
    %2970 = vmatpush1.bf16.msra.mxu0 %v2777
    %2971 = vmatprep.subr.bf16.mxu0 0
    %2972 = vmatpush1.bf16.msra.mxu0 %v2776
    %2973 = vmatprep.subr.bf16.mxu0 0
    %2974 = vmatpush1.bf16.msra.mxu0 %v2775
    %2975 = vmatprep.subr.bf16.mxu0 0
    %2976 = vmatpush2.bf16.msra.mxu0 %v2790
    %2977 = vmatprep.subr.bf16.mxu0 0
    %2978 = vmatpush2.bf16.msra.mxu0 %v2789
    %2979 = vmatprep.subr.bf16.mxu0 0
    %2980 = vmatpush2.bf16.msra.mxu0 %v2788
    %2981 = vmatprep.subr.bf16.mxu0 0
    %2982 = vmatpush2.bf16.msra.mxu0 %v2787
    %2983 = vmatprep.subr.bf16.mxu0 0
    %2984 = vmatpush2.bf16.msra.mxu0 %v2786
    %2985 = vmatprep.subr.bf16.mxu0 0
    %2986 = vmatpush2.bf16.msra.mxu0 %v2785
    %2987 = vmatprep.subr.bf16.mxu0 0
    %2988 = vmatpush2.bf16.msra.mxu0 %v2784
    %2989 = vmatprep.subr.bf16.mxu0 0
    %2990 = vmatpush2.bf16.msra.mxu0 %v2783
    %2991 = vmatprep.mubr.bf16.mxu0 %v2265
    %2992 = vmatmul.mubr.bf16.gmra.mxu0 %v2264
    %v2993 = vpop.f32.mrf.mxu0
    %v2994 = vadd.f32 %v2954, %v2993
    %v2995 = vpop.f32.mrf.mxu0
    %v2996 = vpop.f32.mrf.mxu0
    %v2997 = vpop.f32.mrf.mxu0
    %2998 = vdwg.mxu0
    %2999 = vmatprep.subr.bf16.mxu0 0
    %3000 = vmatpush1.bf16.msra.mxu0 %v2798
    %3001 = vmatprep.subr.bf16.mxu0 0
    %3002 = vmatpush1.bf16.msra.mxu0 %v2797
    %3003 = vmatprep.subr.bf16.mxu0 0
    %3004 = vmatpush1.bf16.msra.mxu0 %v2796
    %3005 = vmatprep.subr.bf16.mxu0 0
    %3006 = vmatpush1.bf16.msra.mxu0 %v2795
    %3007 = vmatprep.subr.bf16.mxu0 0
    %3008 = vmatpush1.bf16.msra.mxu0 %v2794
    %3009 = vmatprep.subr.bf16.mxu0 0
    %3010 = vmatpush1.bf16.msra.mxu0 %v2793
    %3011 = vmatprep.subr.bf16.mxu0 0
    %3012 = vmatpush1.bf16.msra.mxu0 %v2792
    %3013 = vmatprep.subr.bf16.mxu0 0
    %3014 = vmatpush1.bf16.msra.mxu0 %v2791
    %3015 = vmatprep.subr.bf16.mxu0 0
    %3016 = vmatpush2.bf16.msra.mxu0 %v2806
    %3017 = vmatprep.subr.bf16.mxu0 0
    %3018 = vmatpush2.bf16.msra.mxu0 %v2805
    %3019 = vmatprep.subr.bf16.mxu0 0
    %3020 = vmatpush2.bf16.msra.mxu0 %v2804
    %3021 = vmatprep.subr.bf16.mxu0 0
    %3022 = vmatpush2.bf16.msra.mxu0 %v2803
    %3023 = vmatprep.subr.bf16.mxu0 0
    %3024 = vmatpush2.bf16.msra.mxu0 %v2802
    %3025 = vmatprep.subr.bf16.mxu0 0
    %3026 = vmatpush2.bf16.msra.mxu0 %v2801
    %3027 = vmatprep.subr.bf16.mxu0 0
    %3028 = vmatpush2.bf16.msra.mxu0 %v2800
    %3029 = vmatprep.subr.bf16.mxu0 0
    %3030 = vmatpush2.bf16.msra.mxu0 %v2799
    %3031 = vmatprep.mubr.bf16.mxu0 %v2267
    %3032 = vmatmul.mubr.bf16.gmra.mxu0 %v2266
    %v3033 = vpop.f32.mrf.mxu0
    %v3034 = vadd.f32 %v2994, %v3033
    %v3035 = vpop.f32.mrf.mxu0
    %v3036 = vpop.f32.mrf.mxu0
    %v3037 = vpop.f32.mrf.mxu0
    %3038 = vdwg.mxu0
    %3039 = vmatprep.subr.bf16.mxu0 0
    %3040 = vmatpush1.bf16.msra.mxu0 %v2814
    %3041 = vmatprep.subr.bf16.mxu0 0
    %3042 = vmatpush1.bf16.msra.mxu0 %v2813
    %3043 = vmatprep.subr.bf16.mxu0 0
    %3044 = vmatpush1.bf16.msra.mxu0 %v2812
    %3045 = vmatprep.subr.bf16.mxu0 0
    %3046 = vmatpush1.bf16.msra.mxu0 %v2811
    %3047 = vmatprep.subr.bf16.mxu0 0
    %3048 = vmatpush1.bf16.msra.mxu0 %v2810
    %3049 = vmatprep.subr.bf16.mxu0 0
    %3050 = vmatpush1.bf16.msra.mxu0 %v2809
    %3051 = vmatprep.subr.bf16.mxu0 0
    %3052 = vmatpush1.bf16.msra.mxu0 %v2808
    %3053 = vmatprep.subr.bf16.mxu0 0
    %3054 = vmatpush1.bf16.msra.mxu0 %v2807
    %3055 = vmatprep.subr.bf16.mxu0 0
    %3056 = vmatpush2.bf16.msra.mxu0 %v2822
    %3057 = vmatprep.subr.bf16.mxu0 0
    %3058 = vmatpush2.bf16.msra.mxu0 %v2821
    %3059 = vmatprep.subr.bf16.mxu0 0
    %3060 = vmatpush2.bf16.msra.mxu0 %v2820
    %3061 = vmatprep.subr.bf16.mxu0 0
    %3062 = vmatpush2.bf16.msra.mxu0 %v2819
    %3063 = vmatprep.subr.bf16.mxu0 0
    %3064 = vmatpush2.bf16.msra.mxu0 %v2818
    %3065 = vmatprep.subr.bf16.mxu0 0
    %3066 = vmatpush2.bf16.msra.mxu0 %v2817
    %3067 = vmatprep.subr.bf16.mxu0 0
    %3068 = vmatpush2.bf16.msra.mxu0 %v2816
    %3069 = vmatprep.subr.bf16.mxu0 0
    %3070 = vmatpush2.bf16.msra.mxu0 %v2815
    %3071 = vmatprep.mubr.bf16.mxu0 %v2269
    %3072 = vmatmul.mubr.bf16.gmra.mxu0 %v2268
    %v3073 = vpop.f32.mrf.mxu0
    %v3074 = vadd.f32 %v3034, %v3073
    %v3075 = vpop.f32.mrf.mxu0
    %v3076 = vpop.f32.mrf.mxu0
    %v3077 = vpop.f32.mrf.mxu0
    %3078 = vdwg.mxu0
    %3079 = vmatprep.subr.bf16.mxu0 0
    %3080 = vmatpush1.bf16.msra.mxu0 %v2830
    %3081 = vmatprep.subr.bf16.mxu0 0
    %3082 = vmatpush1.bf16.msra.mxu0 %v2829
    %3083 = vmatprep.subr.bf16.mxu0 0
    %3084 = vmatpush1.bf16.msra.mxu0 %v2828
    %3085 = vmatprep.subr.bf16.mxu0 0
    %3086 = vmatpush1.bf16.msra.mxu0 %v2827
    %3087 = vmatprep.subr.bf16.mxu0 0
    %3088 = vmatpush1.bf16.msra.mxu0 %v2826
    %3089 = vmatprep.subr.bf16.mxu0 0
    %3090 = vmatpush1.bf16.msra.mxu0 %v2825
    %3091 = vmatprep.subr.bf16.mxu0 0
    %3092 = vmatpush1.bf16.msra.mxu0 %v2824
    %3093 = vmatprep.subr.bf16.mxu0 0
    %3094 = vmatpush1.bf16.msra.mxu0 %v2823
    %3095 = vmatprep.subr.bf16.mxu0 0
    %3096 = vmatpush2.bf16.msra.mxu0 %v2838
    %3097 = vmatprep.subr.bf16.mxu0 0
    %3098 = vmatpush2.bf16.msra.mxu0 %v2837
    %3099 = vmatprep.subr.bf16.mxu0 0
    %3100 = vmatpush2.bf16.msra.mxu0 %v2836
    %3101 = vmatprep.subr.bf16.mxu0 0
    %3102 = vmatpush2.bf16.msra.mxu0 %v2835
    %3103 = vmatprep.subr.bf16.mxu0 0
    %3104 = vmatpush2.bf16.msra.mxu0 %v2834
    %3105 = vmatprep.subr.bf16.mxu0 0
    %3106 = vmatpush2.bf16.msra.mxu0 %v2833
    %3107 = vmatprep.subr.bf16.mxu0 0
    %3108 = vmatpush2.bf16.msra.mxu0 %v2832
    %3109 = vmatprep.subr.bf16.mxu0 0
    %3110 = vmatpush2.bf16.msra.mxu0 %v2831
    %3111 = vmatprep.mubr.bf16.mxu0 %v2271
    %3112 = vmatmul.mubr.bf16.gmra.mxu0 %v2270
    %v3113 = vpop.f32.mrf.mxu0
    %v3114 = vadd.f32 %v3074, %v3113
    %v3115 = vpop.f32.mrf.mxu0
    %v3116 = vpop.f32.mrf.mxu0
    %v3117 = vpop.f32.mrf.mxu0
    %3118 = vdwg.mxu0
    %3119 = vadd.xlane.f32.xlu0 %v3114
    %v3120 = vpop.xlane.xlu0 %3119
    %v3121 = vrcp.pop 128.0
    %v3122 = vmul.f32 %v3120, %v3121
    %v3123 = vsub.f32 %v3114, %v3122
    %v3124 = vmul.f32 %v3123, %v3123
    %3125 = vadd.xlane.f32.xlu0 %v3124
    %v3126 = vpop.xlane.xlu0 %3125
    %v3127 = vmul.f32 %v3126, %v3121
    %v3128 = vadd.f32 %v3127, 1e-05
    %v3129 = vrsqrt.pop %v3128
    %v3130 = vmul.f32 %v3123, %v3129
    %v3131 = vld [vmem:[%s7] sm:$0x1]
    %v3133 = vlaneseq
    %v3134 = vshrl.u32 %v3133, 7
    %v3135 = vsub.s32 0, %v3134
    %v3136 = vrot.slane %v3131, %v3135
    %v3138 = vmul.f32 %v3130, %v3136
    %v3139 = vld [vmem:[%s8] sm:$0x1]
    %v3141 = vlaneseq
    %v3142 = vshrl.u32 %v3141, 7
    %v3143 = vsub.s32 0, %v3142
    %v3144 = vrot.slane %v3139, %v3143
    %v3146 = vadd.f32 %v3138, %v3144
    %3147 = vst [vmem:[#allocation6] sm:$0xff] %v3146
    // Predicated region
    $region42: #{tpu_custom_call.1} parent=1 // pred_check
      _
    $region43: #{tpu_custom_call.1} parent=1 // pred_check_branch
      %3149 = sbr.rel (0) target = $region45
    $region44: #{tpu_custom_call.1} parent=1 // pred_region
      %s3151 = ssub.s32 128, 128
      %3152 = vsyncadd [#allocation5], %s3151
      %s3154 = sshll.u32 [#allocation6], 4
      %s3155 = int_to_ptr.vmem [resolvable:$true] %s3154
      %3157 = dma.vmem_to_hbm [thread:$0]  %s3155, 128, %s9, [#allocation5]
    $region45: #{tpu_custom_call.1} parent=1 // pred_fallthru
      _
    // Predicated region
    $region46: #{tpu_custom_call.1} parent=1 // pred_check
      _
    $region47: #{tpu_custom_call.1} parent=1 // pred_check_branch
      %3159 = sbr.rel (0) target = $region49
    $region48: #{tpu_custom_call.1} parent=1 // pred_region
      %3160 = dma.done [#allocation5], 128
    $region49: #{tpu_custom_call.1} parent=1 // pred_fallthru
      _
    %3161 = vsyncpa [#allocation4], 1
    %3162 = vsyncpa [#allocation5], 1

</llo_original>
